<compile_context>
chip_gen: v7x
topology: tpu7x:2x2x1
jax: 0.10.0
libtpu: 0.0.40
codegen_flags: <defaults>
</compile_context>

<pallas_src>
import jax
import jax.numpy as jnp
from jax.experimental import pallas as pl
from jax.experimental.pallas import tpu as pltpu


def self_attention_kernel(
    # inputs
    inputs_ref,   # (B, S, F)
    w1q_ref,      # (F, F)   attention Linear1, half that multiplies x_i ("query")
    w1a_ref,      # (F, F)   attention Linear1, half that multiplies annotations
    b1_ref,       # (1, F)
    w2_ref,       # (1, F)   attention Linear2 weight stored as a row
    wx_ref,       # (F, 3H)  fused [Wxz | Wxr | Wxg]
    wh_ref,       # (H, 3H)  fused [Whz | Whr | Whg]
    bg_ref,       # (1, 3H)  fused [bz  | br  | bg ]
    wout_ref,     # (H, O)
    bout_ref,     # (1, O)
    # outputs
    out_ref,      # (B, O)      sigmoid(out(hidden_T))
    acts_ref,     # (B, S, F)   all contexts ("activations"), written once
):
    B, S, F = inputs_ref.shape
    H = wh_ref.shape[0]

    inputs = inputs_ref[...]                       # (B, S, F)
    x2d = inputs.reshape(B * S, F)

    # --- sequence-invariant + per-step projections: ONE matmul each ---------
    ann_proj = (jnp.dot(x2d, w1a_ref[...], preferred_element_type=jnp.float32)
                + b1_ref[...]).reshape(B, S, F)    # indexed by annotation step s
    qry_proj = jnp.dot(x2d, w1q_ref[...],
                       preferred_element_type=jnp.float32).reshape(B, S, F)
    # (indexed by query step i)

    # --- pairwise attention MLP (all i, all s at once) -----------------------
    # h1[b, i, s, :] = relu(x_i @ W1q + a_s @ W1a + b1)
    h1 = jax.nn.relu(qry_proj[:, :, None, :] + ann_proj[:, None, :, :])  # (B,S,S,F)
    # logits[b, i, s] = h1[b, i, s, :] @ w2   (+b2 dropped: softmax-invariant)
    logits = jnp.sum(h1 * w2_ref[...], axis=-1)                          # (B,S,S)

    # --- softmax over annotation axis (last axis) ----------------------------
    m = jnp.max(logits, axis=-1, keepdims=True)
    e = jnp.exp(logits - m)
    denom = jnp.sum(e, axis=-1, keepdims=True)
    attn = e * pl.reciprocal(denom, approx=True)                         # (B,S,S)

    # --- contexts for every step in one batched matmul -----------------------
    context = jnp.einsum('bis,bsf->bif', attn, inputs,
                         preferred_element_type=jnp.float32)             # (B,S,F)
    acts_ref[...] = context                                              # single store

    # --- GRU input-gate projections for ALL steps, one fused matmul ----------
    xg_all = jnp.dot(context.reshape(B * S, F), wx_ref[...],
                     preferred_element_type=jnp.float32).reshape(B, S, 3 * H)

    bgates = bg_ref[...]
    bz, br, bgc = bgates[:, :H], bgates[:, H:2 * H], bgates[:, 2 * H:]
    wh = wh_ref[...]

    # --- sequential GRU recurrence, hidden carried in registers --------------
    hidden = jnp.zeros((B, H), jnp.float32)
    for i in range(S):                              # S is static -> fully unrolled
        xg = xg_all[:, i, :]                                             # (B, 3H)
        hg = jnp.dot(hidden, wh, preferred_element_type=jnp.float32)     # (B, 3H)
        z = jax.nn.sigmoid(xg[:, :H] + hg[:, :H] + bz)
        r = jax.nn.sigmoid(xg[:, H:2 * H] + hg[:, H:2 * H] + br)
        g = jnp.tanh(xg[:, 2 * H:] + r * (hg[:, 2 * H:] + bgc))
        hidden = (1.0 - z) * g + z * hidden

    # --- final output projection ---------------------------------------------
    out_ref[...] = jax.nn.sigmoid(
        jnp.dot(hidden, wout_ref[...], preferred_element_type=jnp.float32)
        + bout_ref[...])


def self_attention_forward(inputs, params):
    B, S, F = inputs.shape
    H = params["whz"].shape[0]
    O = params["wout"].shape[1]

    # Host-side weight plumbing (done once per call; cheap XLA ops):
    w1 = params["w1"]
    w1q, w1a = w1[:F, :], w1[F:, :]                     # split the concat weight
    w2r = params["w2"].T                                # (1, F)
    wx = jnp.concatenate([params["wxz"], params["wxr"], params["wxg"]], axis=1)
    wh = jnp.concatenate([params["whz"], params["whr"], params["whg"]], axis=1)
    bg = jnp.concatenate([params["bz"], params["br"], params["bg"]], axis=1)

    in_arrays = [inputs, w1q, w1a, params["b1"], w2r, wx, wh, bg,
                 params["wout"], params["bout"]]

    vmem = pl.BlockSpec(memory_space=pltpu.MemorySpace.VMEM)
    out, acts_bsf = pl.pallas_call(
        self_attention_kernel,
        out_shape=(jax.ShapeDtypeStruct((B, O), jnp.float32),
                   jax.ShapeDtypeStruct((B, S, F), jnp.float32)),
        in_specs=[vmem] * len(in_arrays),
        out_specs=(vmem, vmem),
    )(*in_arrays)

    # Match torch's list-of-per-step activations stacked along axis 0: (S, B, F)
    acts = jnp.transpose(acts_bsf, (1, 0, 2))
    return out, acts


# ------------------------- parameters & reference -----------------------------


def make_params(key, feature_size, hidden_size, output_size):
    def xavier(k, shape):
        fan_in, fan_out = shape
        limit = (6.0 / (fan_in + fan_out)) ** 0.5
        return jax.random.uniform(k, shape, jnp.float32, -limit, limit)

    ks = jax.random.split(key, 12)
    F, H, O = feature_size, hidden_size, output_size
    return dict(
        # attention net (hidden_size of Attention == feature_size)
        w1=xavier(ks[0], (2 * F, F)), b1=jnp.zeros((1, F), jnp.float32),
        w2=xavier(ks[1], (F, 1)),     b2=jnp.zeros((1, 1), jnp.float32),
        # GRU cell
        wxz=xavier(ks[2], (F, H)), whz=xavier(ks[3], (H, H)), bz=jnp.zeros((1, H), jnp.float32),
        wxr=xavier(ks[4], (F, H)), whr=xavier(ks[5], (H, H)), br=jnp.zeros((1, H), jnp.float32),
        wxg=xavier(ks[6], (F, H)), whg=xavier(ks[7], (H, H)), bg=jnp.zeros((1, H), jnp.float32),
        # output projection
        wout=xavier(ks[8], (H, O)), bout=jnp.zeros((1, O), jnp.float32),
    )


def reference_forward(inputs, params):
    """Pure-JAX mirror of the PyTorch SelfAttention.forward (for checking)."""
    B, S, F = inputs.shape
    H = params["whz"].shape[0]
    hidden = jnp.zeros((B, H), jnp.float32)
    acts = []
    for i in range(S):
        x = inputs[:, i, :]
        expanded = jnp.broadcast_to(x[:, None, :], (B, S, F))
        concat = jnp.concatenate([expanded, inputs], axis=2)       # (B, S, 2F)
        h1 = jax.nn.relu(concat @ params["w1"] + params["b1"][0])  # (B, S, F)
        logits = h1 @ params["w2"] + params["b2"][0]               # (B, S, 1)
        attn = jax.nn.softmax(logits, axis=1)
        context = jnp.sum(attn * inputs, axis=1)                   # (B, F)
        acts.append(context)
        z = jax.nn.sigmoid(context @ params["wxz"] + hidden @ params["whz"] + params["bz"][0])
        r = jax.nn.sigmoid(context @ params["wxr"] + hidden @ params["whr"] + params["br"][0])
        g = jnp.tanh(context @ params["wxg"] + r * (hidden @ params["whg"] + params["bg"][0]))
        hidden = (1.0 - z) * g + z * hidden
    out = jax.nn.sigmoid(hidden @ params["wout"] + params["bout"][0])
    return out, jnp.stack(acts, axis=0)


if __name__ == "__main__":
    batch, seq_len = 2, 8
    feature_size, hidden_size, output_size = 32, 32, 16

    key = jax.random.PRNGKey(0)
    k_in, k_p = jax.random.split(key)
    inputs = jax.random.normal(k_in, (batch, seq_len, feature_size), jnp.float32)
    params = make_params(k_p, feature_size, hidden_size, output_size)

    out, acts = self_attention_forward(inputs, params)
    out = jax.block_until_ready(out)
    acts = jax.block_until_ready(acts)

    ref_out, ref_acts = reference_forward(inputs, params)
    assert out.shape == (batch, output_size)
    assert acts.shape == (seq_len, batch, feature_size)
    # Tolerance covers the hardware-approximate EUP reciprocal in the softmax.
    assert jnp.allclose(out, ref_out, rtol=2e-3, atol=2e-3)
    assert jnp.allclose(acts, ref_acts, rtol=2e-3, atol=2e-3)

    print("KERNEL_OK")
</pallas_src>

<mosaic_0001>
module attributes {stable_mosaic.version = 11 : i64} {
  func.func @self_attention_kernel(%arg0: memref<2x8x32xf32, #tpu.memory_space<vmem>>, %arg1: memref<32x32xf32, #tpu.memory_space<vmem>>, %arg2: memref<32x32xf32, #tpu.memory_space<vmem>>, %arg3: memref<1x32xf32, #tpu.memory_space<vmem>>, %arg4: memref<1x32xf32, #tpu.memory_space<vmem>>, %arg5: memref<32x96xf32, #tpu.memory_space<vmem>>, %arg6: memref<32x96xf32, #tpu.memory_space<vmem>>, %arg7: memref<1x96xf32, #tpu.memory_space<vmem>>, %arg8: memref<32x16xf32, #tpu.memory_space<vmem>>, %arg9: memref<1x16xf32, #tpu.memory_space<vmem>>, %arg10: memref<2x16xf32, #tpu.memory_space<vmem>>, %arg11: memref<2x8x32xf32, #tpu.memory_space<vmem>>) attributes {dimension_semantics = [], scalar_prefetch = 0 : i64, scratch_operands = 0 : i64, tpu.core_type = #tpu.core_type<tc>} {
    %c0 = arith.constant 0 : index
    %c0_0 = arith.constant 0 : index
    %c0_1 = arith.constant 0 : index
    %0 = vector.load %arg0[%c0, %c0_0, %c0_1] : memref<2x8x32xf32, #tpu.memory_space<vmem>>, vector<2x8x32xf32>
    %1 = vector.shape_cast %0 : vector<2x8x32xf32> to vector<16x32xf32>
    %c0_2 = arith.constant 0 : index
    %c0_3 = arith.constant 0 : index
    %2 = vector.load %arg2[%c0_2, %c0_3] : memref<32x32xf32, #tpu.memory_space<vmem>>, vector<32x32xf32>
    %cst = arith.constant dense<0.000000e+00> : vector<16x32xf32>
    %3 = tpu.matmul %1, %2, %cst {dimension_numbers = #tpu.dot_dimension_numbers<[1], [0], [0], [1], [0, 0, 1, 1], [], []>} : vector<16x32xf32>, vector<32x32xf32>, vector<16x32xf32> -> vector<16x32xf32>
    %c0_4 = arith.constant 0 : index
    %c0_5 = arith.constant 0 : index
    %4 = vector.load %arg3[%c0_4, %c0_5] : memref<1x32xf32, #tpu.memory_space<vmem>>, vector<1x32xf32>
    %5 = vector.broadcast %4 : vector<1x32xf32> to vector<16x32xf32>
    %6 = arith.addf %3, %5 : vector<16x32xf32>
    %7 = vector.shape_cast %6 : vector<16x32xf32> to vector<2x8x32xf32>
    %c0_6 = arith.constant 0 : index
    %c0_7 = arith.constant 0 : index
    %8 = vector.load %arg1[%c0_6, %c0_7] : memref<32x32xf32, #tpu.memory_space<vmem>>, vector<32x32xf32>
    %cst_8 = arith.constant dense<0.000000e+00> : vector<16x32xf32>
    %9 = tpu.matmul %1, %8, %cst_8 {dimension_numbers = #tpu.dot_dimension_numbers<[1], [0], [0], [1], [0, 0, 1, 1], [], []>} : vector<16x32xf32>, vector<32x32xf32>, vector<16x32xf32> -> vector<16x32xf32>
    %10 = vector.shape_cast %9 : vector<16x32xf32> to vector<2x8x32xf32>
    %11 = vector.shape_cast %10 : vector<2x8x32xf32> to vector<2x8x1x32xf32>
    %12 = vector.shape_cast %7 : vector<2x8x32xf32> to vector<2x1x8x32xf32>
    %13 = vector.broadcast %11 : vector<2x8x1x32xf32> to vector<2x8x8x32xf32>
    %14 = vector.broadcast %12 : vector<2x1x8x32xf32> to vector<2x8x8x32xf32>
    %15 = arith.addf %13, %14 : vector<2x8x8x32xf32>
    %cst_9 = arith.constant 0.000000e+00 : f32
    %16 = vector.broadcast %cst_9 : f32 to vector<2x8x8x32xf32>
    %17 = arith.maximumf %15, %16 : vector<2x8x8x32xf32>
    %c0_10 = arith.constant 0 : index
    %c0_11 = arith.constant 0 : index
    %18 = vector.load %arg4[%c0_10, %c0_11] : memref<1x32xf32, #tpu.memory_space<vmem>>, vector<1x32xf32>
    %19 = vector.shape_cast %18 : vector<1x32xf32> to vector<1x1x1x32xf32>
    %20 = vector.broadcast %19 : vector<1x1x1x32xf32> to vector<2x8x8x32xf32>
    %21 = arith.mulf %17, %20 : vector<2x8x8x32xf32>
    %cst_12 = arith.constant dense<0.000000e+00> : vector<2x8x8xf32>
    %22 = vector.multi_reduction <add>, %21, %cst_12 [3] : vector<2x8x8x32xf32> to vector<2x8x8xf32>
    %cst_13 = arith.constant dense<0xFF800000> : vector<2x8xf32>
    %23 = vector.multi_reduction <maximumf>, %22, %cst_13 [2] : vector<2x8x8xf32> to vector<2x8xf32>
    %24 = vector.shape_cast %23 : vector<2x8xf32> to vector<2x8x1xf32>
    %25 = vector.broadcast %24 : vector<2x8x1xf32> to vector<2x8x8xf32>
    %26 = arith.subf %22, %25 : vector<2x8x8xf32>
    %27 = math.exp %26 : vector<2x8x8xf32>
    %cst_14 = arith.constant dense<0.000000e+00> : vector<2x8xf32>
    %28 = vector.multi_reduction <add>, %27, %cst_14 [2] : vector<2x8x8xf32> to vector<2x8xf32>
    %29 = vector.shape_cast %28 : vector<2x8xf32> to vector<2x8x1xf32>
    %30 = tpu.reciprocal %29 {approx = true} : vector<2x8x1xf32> -> vector<2x8x1xf32>
    %31 = vector.broadcast %30 : vector<2x8x1xf32> to vector<2x8x8xf32>
    %32 = arith.mulf %27, %31 : vector<2x8x8xf32>
    "tpu.trace_start"() <{level = 10 : i32, message = "bis,bsf->bif"}> : () -> ()
    %cst_15 = arith.constant dense<0.000000e+00> : vector<2x8x32xf32>
    %33 = tpu.matmul %32, %0, %cst_15 {dimension_numbers = #tpu.dot_dimension_numbers<[2], [1], [1], [2], [0, 0, 0, 1, 1, 2], [0], [0]>} : vector<2x8x8xf32>, vector<2x8x32xf32>, vector<2x8x32xf32> -> vector<2x8x32xf32>
    "tpu.trace_stop"() : () -> ()
    %c0_16 = arith.constant 0 : index
    %c0_17 = arith.constant 0 : index
    %c0_18 = arith.constant 0 : index
    %34 = vector.load %arg11[%c0_16, %c0_17, %c0_18] : memref<2x8x32xf32, #tpu.memory_space<vmem>>, vector<2x8x32xf32>
    tpu.vector_store %arg11[%c0_16, %c0_17, %c0_18], %33 {strides = array<i32>} : memref<2x8x32xf32, #tpu.memory_space<vmem>>, vector<2x8x32xf32>,
    %35 = vector.shape_cast %33 : vector<2x8x32xf32> to vector<16x32xf32>
    %c0_19 = arith.constant 0 : index
    %c0_20 = arith.constant 0 : index
    %36 = vector.load %arg5[%c0_19, %c0_20] : memref<32x96xf32, #tpu.memory_space<vmem>>, vector<32x96xf32>
    %cst_21 = arith.constant dense<0.000000e+00> : vector<16x96xf32>
    %37 = tpu.matmul %35, %36, %cst_21 {dimension_numbers = #tpu.dot_dimension_numbers<[1], [0], [0], [1], [0, 0, 1, 1], [], []>} : vector<16x32xf32>, vector<32x96xf32>, vector<16x96xf32> -> vector<16x96xf32>
    %38 = vector.shape_cast %37 : vector<16x96xf32> to vector<2x8x96xf32>
    %c0_22 = arith.constant 0 : index
    %c0_23 = arith.constant 0 : index
    %39 = vector.load %arg7[%c0_22, %c0_23] : memref<1x96xf32, #tpu.memory_space<vmem>>, vector<1x96xf32>
    %40 = vector.extract_strided_slice %39 {offsets = [0, 0], sizes = [1, 32], strides = [1, 1]} : vector<1x96xf32> to vector<1x32xf32>
    %41 = vector.extract_strided_slice %39 {offsets = [0, 32], sizes = [1, 32], strides = [1, 1]} : vector<1x96xf32> to vector<1x32xf32>
    %42 = vector.extract_strided_slice %39 {offsets = [0, 64], sizes = [1, 32], strides = [1, 1]} : vector<1x96xf32> to vector<1x32xf32>
    %c0_24 = arith.constant 0 : index
    %c0_25 = arith.constant 0 : index
    %43 = vector.load %arg6[%c0_24, %c0_25] : memref<32x96xf32, #tpu.memory_space<vmem>>, vector<32x96xf32>
    %cst_26 = arith.constant 0.000000e+00 : f32
    %44 = vector.broadcast %cst_26 : f32 to vector<2x32xf32>
    %45 = vector.extract_strided_slice %38 {offsets = [0, 0, 0], sizes = [2, 1, 96], strides = [1, 1, 1]} : vector<2x8x96xf32> to vector<2x1x96xf32>
    %46 = vector.shape_cast %45 : vector<2x1x96xf32> to vector<2x96xf32>
    %cst_27 = arith.constant dense<0.000000e+00> : vector<2x96xf32>
    %47 = tpu.matmul %44, %43, %cst_27 {dimension_numbers = #tpu.dot_dimension_numbers<[1], [0], [0], [1], [0, 0, 1, 1], [], []>} : vector<2x32xf32>, vector<32x96xf32>, vector<2x96xf32> -> vector<2x96xf32>
    %48 = vector.extract_strided_slice %46 {offsets = [0, 0], sizes = [2, 32], strides = [1, 1]} : vector<2x96xf32> to vector<2x32xf32>
    %49 = vector.extract_strided_slice %47 {offsets = [0, 0], sizes = [2, 32], strides = [1, 1]} : vector<2x96xf32> to vector<2x32xf32>
    %50 = arith.addf %48, %49 : vector<2x32xf32>
    %51 = vector.broadcast %40 : vector<1x32xf32> to vector<2x32xf32>
    %52 = arith.addf %50, %51 : vector<2x32xf32>
    %53 = arith.negf %52 : vector<2x32xf32>
    %54 = math.exp %53 : vector<2x32xf32>
    %cst_28 = arith.constant 1.000000e+00 : f32
    %55 = vector.broadcast %cst_28 : f32 to vector<2x32xf32>
    %56 = arith.addf %55, %54 : vector<2x32xf32>
    %57 = arith.divf %55, %56 : vector<2x32xf32>
    %58 = vector.extract_strided_slice %46 {offsets = [0, 32], sizes = [2, 32], strides = [1, 1]} : vector<2x96xf32> to vector<2x32xf32>
    %59 = vector.extract_strided_slice %47 {offsets = [0, 32], sizes = [2, 32], strides = [1, 1]} : vector<2x96xf32> to vector<2x32xf32>
    %60 = arith.addf %58, %59 : vector<2x32xf32>
    %61 = vector.broadcast %41 : vector<1x32xf32> to vector<2x32xf32>
    %62 = arith.addf %60, %61 : vector<2x32xf32>
    %63 = arith.negf %62 : vector<2x32xf32>
    %64 = math.exp %63 : vector<2x32xf32>
    %cst_29 = arith.constant 1.000000e+00 : f32
    %65 = vector.broadcast %cst_29 : f32 to vector<2x32xf32>
    %66 = arith.addf %65, %64 : vector<2x32xf32>
    %67 = arith.divf %65, %66 : vector<2x32xf32>
    %68 = vector.extract_strided_slice %46 {offsets = [0, 64], sizes = [2, 32], strides = [1, 1]} : vector<2x96xf32> to vector<2x32xf32>
    %69 = vector.extract_strided_slice %47 {offsets = [0, 64], sizes = [2, 32], strides = [1, 1]} : vector<2x96xf32> to vector<2x32xf32>
    %70 = vector.broadcast %42 : vector<1x32xf32> to vector<2x32xf32>
    %71 = arith.addf %69, %70 : vector<2x32xf32>
    %72 = arith.mulf %67, %71 : vector<2x32xf32>
    %73 = arith.addf %68, %72 : vector<2x32xf32>
    %74 = math.tanh %73 : vector<2x32xf32>
    %cst_30 = arith.constant 1.000000e+00 : f32
    %75 = vector.broadcast %cst_30 : f32 to vector<2x32xf32>
    %76 = arith.subf %75, %57 : vector<2x32xf32>
    %77 = arith.mulf %76, %74 : vector<2x32xf32>
    %78 = arith.mulf %57, %44 : vector<2x32xf32>
    %79 = arith.addf %77, %78 : vector<2x32xf32>
    %80 = vector.extract_strided_slice %38 {offsets = [0, 1, 0], sizes = [2, 1, 96], strides = [1, 1, 1]} : vector<2x8x96xf32> to vector<2x1x96xf32>
    %81 = vector.shape_cast %80 : vector<2x1x96xf32> to vector<2x96xf32>
    %cst_31 = arith.constant dense<0.000000e+00> : vector<2x96xf32>
    %82 = tpu.matmul %79, %43, %cst_31 {dimension_numbers = #tpu.dot_dimension_numbers<[1], [0], [0], [1], [0, 0, 1, 1], [], []>} : vector<2x32xf32>, vector<32x96xf32>, vector<2x96xf32> -> vector<2x96xf32>
    %83 = vector.extract_strided_slice %81 {offsets = [0, 0], sizes = [2, 32], strides = [1, 1]} : vector<2x96xf32> to vector<2x32xf32>
    %84 = vector.extract_strided_slice %82 {offsets = [0, 0], sizes = [2, 32], strides = [1, 1]} : vector<2x96xf32> to vector<2x32xf32>
    %85 = arith.addf %83, %84 : vector<2x32xf32>
    %86 = vector.broadcast %40 : vector<1x32xf32> to vector<2x32xf32>
    %87 = arith.addf %85, %86 : vector<2x32xf32>
    %88 = arith.negf %87 : vector<2x32xf32>
    %89 = math.exp %88 : vector<2x32xf32>
    %cst_32 = arith.constant 1.000000e+00 : f32
    %90 = vector.broadcast %cst_32 : f32 to vector<2x32xf32>
    %91 = arith.addf %90, %89 : vector<2x32xf32>
    %92 = arith.divf %90, %91 : vector<2x32xf32>
    %93 = vector.extract_strided_slice %81 {offsets = [0, 32], sizes = [2, 32], strides = [1, 1]} : vector<2x96xf32> to vector<2x32xf32>
    %94 = vector.extract_strided_slice %82 {offsets = [0, 32], sizes = [2, 32], strides = [1, 1]} : vector<2x96xf32> to vector<2x32xf32>
    %95 = arith.addf %93, %94 : vector<2x32xf32>
    %96 = vector.broadcast %41 : vector<1x32xf32> to vector<2x32xf32>
    %97 = arith.addf %95, %96 : vector<2x32xf32>
    %98 = arith.negf %97 : vector<2x32xf32>
    %99 = math.exp %98 : vector<2x32xf32>
    %cst_33 = arith.constant 1.000000e+00 : f32
    %100 = vector.broadcast %cst_33 : f32 to vector<2x32xf32>
    %101 = arith.addf %100, %99 : vector<2x32xf32>
    %102 = arith.divf %100, %101 : vector<2x32xf32>
    %103 = vector.extract_strided_slice %81 {offsets = [0, 64], sizes = [2, 32], strides = [1, 1]} : vector<2x96xf32> to vector<2x32xf32>
    %104 = vector.extract_strided_slice %82 {offsets = [0, 64], sizes = [2, 32], strides = [1, 1]} : vector<2x96xf32> to vector<2x32xf32>
    %105 = vector.broadcast %42 : vector<1x32xf32> to vector<2x32xf32>
    %106 = arith.addf %104, %105 : vector<2x32xf32>
    %107 = arith.mulf %102, %106 : vector<2x32xf32>
    %108 = arith.addf %103, %107 : vector<2x32xf32>
    %109 = math.tanh %108 : vector<2x32xf32>
    %cst_34 = arith.constant 1.000000e+00 : f32
    %110 = vector.broadcast %cst_34 : f32 to vector<2x32xf32>
    %111 = arith.subf %110, %92 : vector<2x32xf32>
    %112 = arith.mulf %111, %109 : vector<2x32xf32>
    %113 = arith.mulf %92, %79 : vector<2x32xf32>
    %114 = arith.addf %112, %113 : vector<2x32xf32>
    %115 = vector.extract_strided_slice %38 {offsets = [0, 2, 0], sizes = [2, 1, 96], strides = [1, 1, 1]} : vector<2x8x96xf32> to vector<2x1x96xf32>
    %116 = vector.shape_cast %115 : vector<2x1x96xf32> to vector<2x96xf32>
    %cst_35 = arith.constant dense<0.000000e+00> : vector<2x96xf32>
    %117 = tpu.matmul %114, %43, %cst_35 {dimension_numbers = #tpu.dot_dimension_numbers<[1], [0], [0], [1], [0, 0, 1, 1], [], []>} : vector<2x32xf32>, vector<32x96xf32>, vector<2x96xf32> -> vector<2x96xf32>
    %118 = vector.extract_strided_slice %116 {offsets = [0, 0], sizes = [2, 32], strides = [1, 1]} : vector<2x96xf32> to vector<2x32xf32>
    %119 = vector.extract_strided_slice %117 {offsets = [0, 0], sizes = [2, 32], strides = [1, 1]} : vector<2x96xf32> to vector<2x32xf32>
    %120 = arith.addf %118, %119 : vector<2x32xf32>
    %121 = vector.broadcast %40 : vector<1x32xf32> to vector<2x32xf32>
    %122 = arith.addf %120, %121 : vector<2x32xf32>
    %123 = arith.negf %122 : vector<2x32xf32>
    %124 = math.exp %123 : vector<2x32xf32>
    %cst_36 = arith.constant 1.000000e+00 : f32
    %125 = vector.broadcast %cst_36 : f32 to vector<2x32xf32>
    %126 = arith.addf %125, %124 : vector<2x32xf32>
    %127 = arith.divf %125, %126 : vector<2x32xf32>
    %128 = vector.extract_strided_slice %116 {offsets = [0, 32], sizes = [2, 32], strides = [1, 1]} : vector<2x96xf32> to vector<2x32xf32>
    %129 = vector.extract_strided_slice %117 {offsets = [0, 32], sizes = [2, 32], strides = [1, 1]} : vector<2x96xf32> to vector<2x32xf32>
    %130 = arith.addf %128, %129 : vector<2x32xf32>
    %131 = vector.broadcast %41 : vector<1x32xf32> to vector<2x32xf32>
    %132 = arith.addf %130, %131 : vector<2x32xf32>
    %133 = arith.negf %132 : vector<2x32xf32>
    %134 = math.exp %133 : vector<2x32xf32>
    %cst_37 = arith.constant 1.000000e+00 : f32
    %135 = vector.broadcast %cst_37 : f32 to vector<2x32xf32>
    %136 = arith.addf %135, %134 : vector<2x32xf32>
    %137 = arith.divf %135, %136 : vector<2x32xf32>
    %138 = vector.extract_strided_slice %116 {offsets = [0, 64], sizes = [2, 32], strides = [1, 1]} : vector<2x96xf32> to vector<2x32xf32>
    %139 = vector.extract_strided_slice %117 {offsets = [0, 64], sizes = [2, 32], strides = [1, 1]} : vector<2x96xf32> to vector<2x32xf32>
    %140 = vector.broadcast %42 : vector<1x32xf32> to vector<2x32xf32>
    %141 = arith.addf %139, %140 : vector<2x32xf32>
    %142 = arith.mulf %137, %141 : vector<2x32xf32>
    %143 = arith.addf %138, %142 : vector<2x32xf32>
    %144 = math.tanh %143 : vector<2x32xf32>
    %cst_38 = arith.constant 1.000000e+00 : f32
    %145 = vector.broadcast %cst_38 : f32 to vector<2x32xf32>
    %146 = arith.subf %145, %127 : vector<2x32xf32>
    %147 = arith.mulf %146, %144 : vector<2x32xf32>
    %148 = arith.mulf %127, %114 : vector<2x32xf32>
    %149 = arith.addf %147, %148 : vector<2x32xf32>
    %150 = vector.extract_strided_slice %38 {offsets = [0, 3, 0], sizes = [2, 1, 96], strides = [1, 1, 1]} : vector<2x8x96xf32> to vector<2x1x96xf32>
    %151 = vector.shape_cast %150 : vector<2x1x96xf32> to vector<2x96xf32>
    %cst_39 = arith.constant dense<0.000000e+00> : vector<2x96xf32>
    %152 = tpu.matmul %149, %43, %cst_39 {dimension_numbers = #tpu.dot_dimension_numbers<[1], [0], [0], [1], [0, 0, 1, 1], [], []>} : vector<2x32xf32>, vector<32x96xf32>, vector<2x96xf32> -> vector<2x96xf32>
    %153 = vector.extract_strided_slice %151 {offsets = [0, 0], sizes = [2, 32], strides = [1, 1]} : vector<2x96xf32> to vector<2x32xf32>
    %154 = vector.extract_strided_slice %152 {offsets = [0, 0], sizes = [2, 32], strides = [1, 1]} : vector<2x96xf32> to vector<2x32xf32>
    %155 = arith.addf %153, %154 : vector<2x32xf32>
    %156 = vector.broadcast %40 : vector<1x32xf32> to vector<2x32xf32>
    %157 = arith.addf %155, %156 : vector<2x32xf32>
    %158 = arith.negf %157 : vector<2x32xf32>
    %159 = math.exp %158 : vector<2x32xf32>
    %cst_40 = arith.constant 1.000000e+00 : f32
    %160 = vector.broadcast %cst_40 : f32 to vector<2x32xf32>
    %161 = arith.addf %160, %159 : vector<2x32xf32>
    %162 = arith.divf %160, %161 : vector<2x32xf32>
    %163 = vector.extract_strided_slice %151 {offsets = [0, 32], sizes = [2, 32], strides = [1, 1]} : vector<2x96xf32> to vector<2x32xf32>
    %164 = vector.extract_strided_slice %152 {offsets = [0, 32], sizes = [2, 32], strides = [1, 1]} : vector<2x96xf32> to vector<2x32xf32>
    %165 = arith.addf %163, %164 : vector<2x32xf32>
    %166 = vector.broadcast %41 : vector<1x32xf32> to vector<2x32xf32>
    %167 = arith.addf %165, %166 : vector<2x32xf32>
    %168 = arith.negf %167 : vector<2x32xf32>
    %169 = math.exp %168 : vector<2x32xf32>
    %cst_41 = arith.constant 1.000000e+00 : f32
    %170 = vector.broadcast %cst_41 : f32 to vector<2x32xf32>
    %171 = arith.addf %170, %169 : vector<2x32xf32>
    %172 = arith.divf %170, %171 : vector<2x32xf32>
    %173 = vector.extract_strided_slice %151 {offsets = [0, 64], sizes = [2, 32], strides = [1, 1]} : vector<2x96xf32> to vector<2x32xf32>
    %174 = vector.extract_strided_slice %152 {offsets = [0, 64], sizes = [2, 32], strides = [1, 1]} : vector<2x96xf32> to vector<2x32xf32>
    %175 = vector.broadcast %42 : vector<1x32xf32> to vector<2x32xf32>
    %176 = arith.addf %174, %175 : vector<2x32xf32>
    %177 = arith.mulf %172, %176 : vector<2x32xf32>
    %178 = arith.addf %173, %177 : vector<2x32xf32>
    %179 = math.tanh %178 : vector<2x32xf32>
    %cst_42 = arith.constant 1.000000e+00 : f32
    %180 = vector.broadcast %cst_42 : f32 to vector<2x32xf32>
    %181 = arith.subf %180, %162 : vector<2x32xf32>
    %182 = arith.mulf %181, %179 : vector<2x32xf32>
    %183 = arith.mulf %162, %149 : vector<2x32xf32>
    %184 = arith.addf %182, %183 : vector<2x32xf32>
    %185 = vector.extract_strided_slice %38 {offsets = [0, 4, 0], sizes = [2, 1, 96], strides = [1, 1, 1]} : vector<2x8x96xf32> to vector<2x1x96xf32>
    %186 = vector.shape_cast %185 : vector<2x1x96xf32> to vector<2x96xf32>
    %cst_43 = arith.constant dense<0.000000e+00> : vector<2x96xf32>
    %187 = tpu.matmul %184, %43, %cst_43 {dimension_numbers = #tpu.dot_dimension_numbers<[1], [0], [0], [1], [0, 0, 1, 1], [], []>} : vector<2x32xf32>, vector<32x96xf32>, vector<2x96xf32> -> vector<2x96xf32>
    %188 = vector.extract_strided_slice %186 {offsets = [0, 0], sizes = [2, 32], strides = [1, 1]} : vector<2x96xf32> to vector<2x32xf32>
    %189 = vector.extract_strided_slice %187 {offsets = [0, 0], sizes = [2, 32], strides = [1, 1]} : vector<2x96xf32> to vector<2x32xf32>
    %190 = arith.addf %188, %189 : vector<2x32xf32>
    %191 = vector.broadcast %40 : vector<1x32xf32> to vector<2x32xf32>
    %192 = arith.addf %190, %191 : vector<2x32xf32>
    %193 = arith.negf %192 : vector<2x32xf32>
    %194 = math.exp %193 : vector<2x32xf32>
    %cst_44 = arith.constant 1.000000e+00 : f32
    %195 = vector.broadcast %cst_44 : f32 to vector<2x32xf32>
    %196 = arith.addf %195, %194 : vector<2x32xf32>
    %197 = arith.divf %195, %196 : vector<2x32xf32>
    %198 = vector.extract_strided_slice %186 {offsets = [0, 32], sizes = [2, 32], strides = [1, 1]} : vector<2x96xf32> to vector<2x32xf32>
    %199 = vector.extract_strided_slice %187 {offsets = [0, 32], sizes = [2, 32], strides = [1, 1]} : vector<2x96xf32> to vector<2x32xf32>
    %200 = arith.addf %198, %199 : vector<2x32xf32>
    %201 = vector.broadcast %41 : vector<1x32xf32> to vector<2x32xf32>
    %202 = arith.addf %200, %201 : vector<2x32xf32>
    %203 = arith.negf %202 : vector<2x32xf32>
    %204 = math.exp %203 : vector<2x32xf32>
    %cst_45 = arith.constant 1.000000e+00 : f32
    %205 = vector.broadcast %cst_45 : f32 to vector<2x32xf32>
    %206 = arith.addf %205, %204 : vector<2x32xf32>
    %207 = arith.divf %205, %206 : vector<2x32xf32>
    %208 = vector.extract_strided_slice %186 {offsets = [0, 64], sizes = [2, 32], strides = [1, 1]} : vector<2x96xf32> to vector<2x32xf32>
    %209 = vector.extract_strided_slice %187 {offsets = [0, 64], sizes = [2, 32], strides = [1, 1]} : vector<2x96xf32> to vector<2x32xf32>
    %210 = vector.broadcast %42 : vector<1x32xf32> to vector<2x32xf32>
    %211 = arith.addf %209, %210 : vector<2x32xf32>
    %212 = arith.mulf %207, %211 : vector<2x32xf32>
    %213 = arith.addf %208, %212 : vector<2x32xf32>
    %214 = math.tanh %213 : vector<2x32xf32>
    %cst_46 = arith.constant 1.000000e+00 : f32
    %215 = vector.broadcast %cst_46 : f32 to vector<2x32xf32>
    %216 = arith.subf %215, %197 : vector<2x32xf32>
    %217 = arith.mulf %216, %214 : vector<2x32xf32>
    %218 = arith.mulf %197, %184 : vector<2x32xf32>
    %219 = arith.addf %217, %218 : vector<2x32xf32>
    %220 = vector.extract_strided_slice %38 {offsets = [0, 5, 0], sizes = [2, 1, 96], strides = [1, 1, 1]} : vector<2x8x96xf32> to vector<2x1x96xf32>
    %221 = vector.shape_cast %220 : vector<2x1x96xf32> to vector<2x96xf32>
    %cst_47 = arith.constant dense<0.000000e+00> : vector<2x96xf32>
    %222 = tpu.matmul %219, %43, %cst_47 {dimension_numbers = #tpu.dot_dimension_numbers<[1], [0], [0], [1], [0, 0, 1, 1], [], []>} : vector<2x32xf32>, vector<32x96xf32>, vector<2x96xf32> -> vector<2x96xf32>
    %223 = vector.extract_strided_slice %221 {offsets = [0, 0], sizes = [2, 32], strides = [1, 1]} : vector<2x96xf32> to vector<2x32xf32>
    %224 = vector.extract_strided_slice %222 {offsets = [0, 0], sizes = [2, 32], strides = [1, 1]} : vector<2x96xf32> to vector<2x32xf32>
    %225 = arith.addf %223, %224 : vector<2x32xf32>
    %226 = vector.broadcast %40 : vector<1x32xf32> to vector<2x32xf32>
    %227 = arith.addf %225, %226 : vector<2x32xf32>
    %228 = arith.negf %227 : vector<2x32xf32>
    %229 = math.exp %228 : vector<2x32xf32>
    %cst_48 = arith.constant 1.000000e+00 : f32
    %230 = vector.broadcast %cst_48 : f32 to vector<2x32xf32>
    %231 = arith.addf %230, %229 : vector<2x32xf32>
    %232 = arith.divf %230, %231 : vector<2x32xf32>
    %233 = vector.extract_strided_slice %221 {offsets = [0, 32], sizes = [2, 32], strides = [1, 1]} : vector<2x96xf32> to vector<2x32xf32>
    %234 = vector.extract_strided_slice %222 {offsets = [0, 32], sizes = [2, 32], strides = [1, 1]} : vector<2x96xf32> to vector<2x32xf32>
    %235 = arith.addf %233, %234 : vector<2x32xf32>
    %236 = vector.broadcast %41 : vector<1x32xf32> to vector<2x32xf32>
    %237 = arith.addf %235, %236 : vector<2x32xf32>
    %238 = arith.negf %237 : vector<2x32xf32>
    %239 = math.exp %238 : vector<2x32xf32>
    %cst_49 = arith.constant 1.000000e+00 : f32
    %240 = vector.broadcast %cst_49 : f32 to vector<2x32xf32>
    %241 = arith.addf %240, %239 : vector<2x32xf32>
    %242 = arith.divf %240, %241 : vector<2x32xf32>
    %243 = vector.extract_strided_slice %221 {offsets = [0, 64], sizes = [2, 32], strides = [1, 1]} : vector<2x96xf32> to vector<2x32xf32>
    %244 = vector.extract_strided_slice %222 {offsets = [0, 64], sizes = [2, 32], strides = [1, 1]} : vector<2x96xf32> to vector<2x32xf32>
    %245 = vector.broadcast %42 : vector<1x32xf32> to vector<2x32xf32>
    %246 = arith.addf %244, %245 : vector<2x32xf32>
    %247 = arith.mulf %242, %246 : vector<2x32xf32>
    %248 = arith.addf %243, %247 : vector<2x32xf32>
    %249 = math.tanh %248 : vector<2x32xf32>
    %cst_50 = arith.constant 1.000000e+00 : f32
    %250 = vector.broadcast %cst_50 : f32 to vector<2x32xf32>
    %251 = arith.subf %250, %232 : vector<2x32xf32>
    %252 = arith.mulf %251, %249 : vector<2x32xf32>
    %253 = arith.mulf %232, %219 : vector<2x32xf32>
    %254 = arith.addf %252, %253 : vector<2x32xf32>
    %255 = vector.extract_strided_slice %38 {offsets = [0, 6, 0], sizes = [2, 1, 96], strides = [1, 1, 1]} : vector<2x8x96xf32> to vector<2x1x96xf32>
    %256 = vector.shape_cast %255 : vector<2x1x96xf32> to vector<2x96xf32>
    %cst_51 = arith.constant dense<0.000000e+00> : vector<2x96xf32>
    %257 = tpu.matmul %254, %43, %cst_51 {dimension_numbers = #tpu.dot_dimension_numbers<[1], [0], [0], [1], [0, 0, 1, 1], [], []>} : vector<2x32xf32>, vector<32x96xf32>, vector<2x96xf32> -> vector<2x96xf32>
    %258 = vector.extract_strided_slice %256 {offsets = [0, 0], sizes = [2, 32], strides = [1, 1]} : vector<2x96xf32> to vector<2x32xf32>
    %259 = vector.extract_strided_slice %257 {offsets = [0, 0], sizes = [2, 32], strides = [1, 1]} : vector<2x96xf32> to vector<2x32xf32>
    %260 = arith.addf %258, %259 : vector<2x32xf32>
    %261 = vector.broadcast %40 : vector<1x32xf32> to vector<2x32xf32>
    %262 = arith.addf %260, %261 : vector<2x32xf32>
    %263 = arith.negf %262 : vector<2x32xf32>
    %264 = math.exp %263 : vector<2x32xf32>
    %cst_52 = arith.constant 1.000000e+00 : f32
    %265 = vector.broadcast %cst_52 : f32 to vector<2x32xf32>
    %266 = arith.addf %265, %264 : vector<2x32xf32>
    %267 = arith.divf %265, %266 : vector<2x32xf32>
    %268 = vector.extract_strided_slice %256 {offsets = [0, 32], sizes = [2, 32], strides = [1, 1]} : vector<2x96xf32> to vector<2x32xf32>
    %269 = vector.extract_strided_slice %257 {offsets = [0, 32], sizes = [2, 32], strides = [1, 1]} : vector<2x96xf32> to vector<2x32xf32>
    %270 = arith.addf %268, %269 : vector<2x32xf32>
    %271 = vector.broadcast %41 : vector<1x32xf32> to vector<2x32xf32>
    %272 = arith.addf %270, %271 : vector<2x32xf32>
    %273 = arith.negf %272 : vector<2x32xf32>
    %274 = math.exp %273 : vector<2x32xf32>
    %cst_53 = arith.constant 1.000000e+00 : f32
    %275 = vector.broadcast %cst_53 : f32 to vector<2x32xf32>
    %276 = arith.addf %275, %274 : vector<2x32xf32>
    %277 = arith.divf %275, %276 : vector<2x32xf32>
    %278 = vector.extract_strided_slice %256 {offsets = [0, 64], sizes = [2, 32], strides = [1, 1]} : vector<2x96xf32> to vector<2x32xf32>
    %279 = vector.extract_strided_slice %257 {offsets = [0, 64], sizes = [2, 32], strides = [1, 1]} : vector<2x96xf32> to vector<2x32xf32>
    %280 = vector.broadcast %42 : vector<1x32xf32> to vector<2x32xf32>
    %281 = arith.addf %279, %280 : vector<2x32xf32>
    %282 = arith.mulf %277, %281 : vector<2x32xf32>
    %283 = arith.addf %278, %282 : vector<2x32xf32>
    %284 = math.tanh %283 : vector<2x32xf32>
    %cst_54 = arith.constant 1.000000e+00 : f32
    %285 = vector.broadcast %cst_54 : f32 to vector<2x32xf32>
    %286 = arith.subf %285, %267 : vector<2x32xf32>
    %287 = arith.mulf %286, %284 : vector<2x32xf32>
    %288 = arith.mulf %267, %254 : vector<2x32xf32>
    %289 = arith.addf %287, %288 : vector<2x32xf32>
    %290 = vector.extract_strided_slice %38 {offsets = [0, 7, 0], sizes = [2, 1, 96], strides = [1, 1, 1]} : vector<2x8x96xf32> to vector<2x1x96xf32>
    %291 = vector.shape_cast %290 : vector<2x1x96xf32> to vector<2x96xf32>
    %cst_55 = arith.constant dense<0.000000e+00> : vector<2x96xf32>
    %292 = tpu.matmul %289, %43, %cst_55 {dimension_numbers = #tpu.dot_dimension_numbers<[1], [0], [0], [1], [0, 0, 1, 1], [], []>} : vector<2x32xf32>, vector<32x96xf32>, vector<2x96xf32> -> vector<2x96xf32>
    %293 = vector.extract_strided_slice %291 {offsets = [0, 0], sizes = [2, 32], strides = [1, 1]} : vector<2x96xf32> to vector<2x32xf32>
    %294 = vector.extract_strided_slice %292 {offsets = [0, 0], sizes = [2, 32], strides = [1, 1]} : vector<2x96xf32> to vector<2x32xf32>
    %295 = arith.addf %293, %294 : vector<2x32xf32>
    %296 = vector.broadcast %40 : vector<1x32xf32> to vector<2x32xf32>
    %297 = arith.addf %295, %296 : vector<2x32xf32>
    %298 = arith.negf %297 : vector<2x32xf32>
    %299 = math.exp %298 : vector<2x32xf32>
    %cst_56 = arith.constant 1.000000e+00 : f32
    %300 = vector.broadcast %cst_56 : f32 to vector<2x32xf32>
    %301 = arith.addf %300, %299 : vector<2x32xf32>
    %302 = arith.divf %300, %301 : vector<2x32xf32>
    %303 = vector.extract_strided_slice %291 {offsets = [0, 32], sizes = [2, 32], strides = [1, 1]} : vector<2x96xf32> to vector<2x32xf32>
    %304 = vector.extract_strided_slice %292 {offsets = [0, 32], sizes = [2, 32], strides = [1, 1]} : vector<2x96xf32> to vector<2x32xf32>
    %305 = arith.addf %303, %304 : vector<2x32xf32>
    %306 = vector.broadcast %41 : vector<1x32xf32> to vector<2x32xf32>
    %307 = arith.addf %305, %306 : vector<2x32xf32>
    %308 = arith.negf %307 : vector<2x32xf32>
    %309 = math.exp %308 : vector<2x32xf32>
    %cst_57 = arith.constant 1.000000e+00 : f32
    %310 = vector.broadcast %cst_57 : f32 to vector<2x32xf32>
    %311 = arith.addf %310, %309 : vector<2x32xf32>
    %312 = arith.divf %310, %311 : vector<2x32xf32>
    %313 = vector.extract_strided_slice %291 {offsets = [0, 64], sizes = [2, 32], strides = [1, 1]} : vector<2x96xf32> to vector<2x32xf32>
    %314 = vector.extract_strided_slice %292 {offsets = [0, 64], sizes = [2, 32], strides = [1, 1]} : vector<2x96xf32> to vector<2x32xf32>
    %315 = vector.broadcast %42 : vector<1x32xf32> to vector<2x32xf32>
    %316 = arith.addf %314, %315 : vector<2x32xf32>
    %317 = arith.mulf %312, %316 : vector<2x32xf32>
    %318 = arith.addf %313, %317 : vector<2x32xf32>
    %319 = math.tanh %318 : vector<2x32xf32>
    %cst_58 = arith.constant 1.000000e+00 : f32
    %320 = vector.broadcast %cst_58 : f32 to vector<2x32xf32>
    %321 = arith.subf %320, %302 : vector<2x32xf32>
    %322 = arith.mulf %321, %319 : vector<2x32xf32>
    %323 = arith.mulf %302, %289 : vector<2x32xf32>
    %324 = arith.addf %322, %323 : vector<2x32xf32>
    %c0_59 = arith.constant 0 : index
    %c0_60 = arith.constant 0 : index
    %325 = vector.load %arg8[%c0_59, %c0_60] : memref<32x16xf32, #tpu.memory_space<vmem>>, vector<32x16xf32>
    %cst_61 = arith.constant dense<0.000000e+00> : vector<2x16xf32>
    %326 = tpu.matmul %324, %325, %cst_61 {dimension_numbers = #tpu.dot_dimension_numbers<[1], [0], [0], [1], [0, 0, 1, 1], [], []>} : vector<2x32xf32>, vector<32x16xf32>, vector<2x16xf32> -> vector<2x16xf32>
    %c0_62 = arith.constant 0 : index
    %c0_63 = arith.constant 0 : index
    %327 = vector.load %arg9[%c0_62, %c0_63] : memref<1x16xf32, #tpu.memory_space<vmem>>, vector<1x16xf32>
    %328 = vector.broadcast %327 : vector<1x16xf32> to vector<2x16xf32>
    %329 = arith.addf %326, %328 : vector<2x16xf32>
    %330 = arith.negf %329 : vector<2x16xf32>
    %331 = math.exp %330 : vector<2x16xf32>
    %cst_64 = arith.constant 1.000000e+00 : f32
    %332 = vector.broadcast %cst_64 : f32 to vector<2x16xf32>
    %333 = arith.addf %332, %331 : vector<2x16xf32>
    %334 = arith.divf %332, %333 : vector<2x16xf32>
    %c0_65 = arith.constant 0 : index
    %c0_66 = arith.constant 0 : index
    %335 = vector.load %arg10[%c0_65, %c0_66] : memref<2x16xf32, #tpu.memory_space<vmem>>, vector<2x16xf32>
    tpu.vector_store %arg10[%c0_65, %c0_66], %334 {strides = array<i32>} : memref<2x16xf32, #tpu.memory_space<vmem>>, vector<2x16xf32>,
    return
  }
}

</mosaic_0001>

<llo_original>
// kernel: tpu_custom_call.1
$region0: #{tpu_custom_call.1}
  #allocation0 [shape = 'u32[]', space=smem, size = 0x4, offset = 0x4, fixed_abs, tag = 'smem constant byte address 0x4 - core index']
  #allocation1 [shape = 'u32[144,128]{1,0:T(1,128)}', space=vmem, size = 0x12000, scoped, tag = 'internal scratch']
  %s0 = inlined_call_operand.hbm [shape: f32[2,8,32], index: 0, kind: input, shape index: {}]
  %s1 = inlined_call_operand.vmem [shape: f32[32,32], index: 1, kind: input, shape index: {}]
  %s2 = inlined_call_operand.hbm [shape: f32[32,32], index: 2, kind: input, shape index: {}]
  %s3 = inlined_call_operand.vmem [shape: f32[1,32], index: 3, kind: input, shape index: {}]
  %s4 = inlined_call_operand.vmem [shape: f32[1,32], index: 4, kind: input, shape index: {}]
  %s5 = inlined_call_operand.vmem [shape: f32[32,96], index: 5, kind: input, shape index: {}]
  %s6 = inlined_call_operand.hbm [shape: f32[32,96], index: 6, kind: input, shape index: {}]
  %s7 = inlined_call_operand.vmem [shape: f32[1,96], index: 7, kind: input, shape index: {}]
  %s8 = inlined_call_operand.vmem [shape: f32[32,16], index: 8, kind: input, shape index: {}]
  %s9 = inlined_call_operand.vmem [shape: f32[1,16], index: 9, kind: input, shape index: {}]
  %s10 = inlined_call_operand.hbm [shape: f32[2,16], index: 10, kind: output, shape index: {0}]
  %s11 = inlined_call_operand.hbm [shape: f32[2,8,32], index: 11, kind: output, shape index: {1}]
  %12 = xla_tuple %s10, %s11
  %s13 = sld [smem:[#allocation0]]
  $region70: #{tpu_custom_call.1} parent=0
    _
  %s15 = ssub.s32 1, %s13
  %s16 = scalar_select 0, %s15, %s13
  $region1: #{tpu_custom_call.1} parent=0
    #allocation2 [shape = 'u8[8192]{0}', space=vmem, size = 0x2000, scoped, tag = 'input window, operand 0, single buffered']
    #allocation3 [shape = 's32[1]{0}', space=sflag, size = 0x4, scoped, tag = 'scoped memory for tpu_custom_call.1']
    #allocation4 [shape = 's32[1]{0}', space=sflag, size = 0x4, scoped, tag = 'scoped memory for tpu_custom_call.1']
    #allocation5 [shape = 'u8[16384]{0}', space=vmem, size = 0x4000, scoped, tag = 'input window, operand 2, single buffered']
    #allocation6 [shape = 's32[1]{0}', space=sflag, size = 0x4, scoped, tag = 'scoped memory for tpu_custom_call.1']
    #allocation7 [shape = 'u8[16384]{0}', space=vmem, size = 0x4000, scoped, tag = 'input window, operand 6, single buffered']
    #allocation8 [shape = 'u8[1024]{0}', space=vmem, size = 0x400, scoped, tag = 'output window, operand 0, single buffered']
    #allocation9 [shape = 'u8[8192]{0}', space=vmem, size = 0x2000, scoped, tag = 'output window, operand 1, single buffered']
    #allocation10 [shape = 's32[1]{0}', space=sflag, size = 0x4, scoped, tag = 'scoped memory for tpu_custom_call.1']
    %17 = vsyncpa [#allocation3], 0
    %18 = vsyncpa [#allocation6], 0
    %19 = vsyncpa [#allocation4], 0
    %20 = vsyncpa [#allocation10], 0
    // Predicated region
    $region2: #{tpu_custom_call.1} parent=1 // pred_check
      _
    $region3: #{tpu_custom_call.1} parent=1 // pred_check_branch
      %22 = sbr.rel (0) target = $region5
    $region4: #{tpu_custom_call.1} parent=1 // pred_region
      %s24 = ssub.s32 256, 256
      %25 = vsyncadd [#allocation3], %s24
      %s26 = sshll.u32 [#allocation2], 4
      %s27 = int_to_ptr.vmem [resolvable:$true] %s26
      %32 = dma.hbm_to_vmem [thread:$0]  %s0, 256, %s27, [#allocation3], 128, 128, 8
    $region5: #{tpu_custom_call.1} parent=1 // pred_fallthru
      _
    // Predicated region
    $region6: #{tpu_custom_call.1} parent=1 // pred_check
      _
    $region7: #{tpu_custom_call.1} parent=1 // pred_check_branch
      %34 = sbr.rel (0) target = $region9
    $region8: #{tpu_custom_call.1} parent=1 // pred_region
      _
    $region9: #{tpu_custom_call.1} parent=1 // pred_fallthru
      _
    // Predicated region
    $region10: #{tpu_custom_call.1} parent=1 // pred_check
      _
    $region11: #{tpu_custom_call.1} parent=1 // pred_check_branch
      %36 = sbr.rel (0) target = $region13
    $region12: #{tpu_custom_call.1} parent=1 // pred_region
      %s38 = ssub.s32 512, 512
      %39 = vsyncadd [#allocation6], %s38
      %s40 = sshll.u32 [#allocation5], 4
      %s41 = int_to_ptr.vmem [resolvable:$true] %s40
      %46 = dma.hbm_to_vmem [thread:$0]  %s2, 512, %s41, [#allocation6], 128, 128, 8
    $region13: #{tpu_custom_call.1} parent=1 // pred_fallthru
      _
    // Predicated region
    $region14: #{tpu_custom_call.1} parent=1 // pred_check
      _
    $region15: #{tpu_custom_call.1} parent=1 // pred_check_branch
      %48 = sbr.rel (0) target = $region17
    $region16: #{tpu_custom_call.1} parent=1 // pred_region
      _
    $region17: #{tpu_custom_call.1} parent=1 // pred_fallthru
      _
    // Predicated region
    $region18: #{tpu_custom_call.1} parent=1 // pred_check
      _
    $region19: #{tpu_custom_call.1} parent=1 // pred_check_branch
      %50 = sbr.rel (0) target = $region21
    $region20: #{tpu_custom_call.1} parent=1 // pred_region
      _
    $region21: #{tpu_custom_call.1} parent=1 // pred_fallthru
      _
    // Predicated region
    $region22: #{tpu_custom_call.1} parent=1 // pred_check
      _
    $region23: #{tpu_custom_call.1} parent=1 // pred_check_branch
      %52 = sbr.rel (0) target = $region25
    $region24: #{tpu_custom_call.1} parent=1 // pred_region
      _
    $region25: #{tpu_custom_call.1} parent=1 // pred_fallthru
      _
    // Predicated region
    $region26: #{tpu_custom_call.1} parent=1 // pred_check
      _
    $region27: #{tpu_custom_call.1} parent=1 // pred_check_branch
      %54 = sbr.rel (0) target = $region29
    $region28: #{tpu_custom_call.1} parent=1 // pred_region
      %s56 = ssub.s32 512, 512
      %57 = vsyncadd [#allocation6], %s56
      %s58 = sshll.u32 [#allocation7], 4
      %s59 = int_to_ptr.vmem [resolvable:$true] %s58
      %64 = dma.hbm_to_vmem [thread:$0]  %s6, 512, %s59, [#allocation6], 128, 128, 8
    $region29: #{tpu_custom_call.1} parent=1 // pred_fallthru
      _
    // Predicated region
    $region30: #{tpu_custom_call.1} parent=1 // pred_check
      _
    $region31: #{tpu_custom_call.1} parent=1 // pred_check_branch
      %66 = sbr.rel (0) target = $region33
    $region32: #{tpu_custom_call.1} parent=1 // pred_region
      _
    $region33: #{tpu_custom_call.1} parent=1 // pred_fallthru
      _
    // Predicated region
    $region34: #{tpu_custom_call.1} parent=1 // pred_check
      _
    $region35: #{tpu_custom_call.1} parent=1 // pred_check_branch
      %68 = sbr.rel (0) target = $region37
    $region36: #{tpu_custom_call.1} parent=1 // pred_region
      _
    $region37: #{tpu_custom_call.1} parent=1 // pred_fallthru
      _
    // Predicated region
    $region38: #{tpu_custom_call.1} parent=1 // pred_check
      _
    $region39: #{tpu_custom_call.1} parent=1 // pred_check_branch
      %70 = sbr.rel (0) target = $region41
    $region40: #{tpu_custom_call.1} parent=1 // pred_region
      _
    $region41: #{tpu_custom_call.1} parent=1 // pred_fallthru
      _
    // Predicated region
    $region42: #{tpu_custom_call.1} parent=1 // pred_check
      _
    $region43: #{tpu_custom_call.1} parent=1 // pred_check_branch
      %72 = sbr.rel (0) target = $region45
    $region44: #{tpu_custom_call.1} parent=1 // pred_region
      %73 = dma.done [#allocation3], 256
    $region45: #{tpu_custom_call.1} parent=1 // pred_fallthru
      _
    // Predicated region
    $region46: #{tpu_custom_call.1} parent=1 // pred_check
      _
    $region47: #{tpu_custom_call.1} parent=1 // pred_check_branch
      %75 = sbr.rel (0) target = $region49
    $region48: #{tpu_custom_call.1} parent=1 // pred_region
      %76 = dma.done [#allocation6], 512
    $region49: #{tpu_custom_call.1} parent=1 // pred_fallthru
      _
    // Predicated region
    $region50: #{tpu_custom_call.1} parent=1 // pred_check
      _
    $region51: #{tpu_custom_call.1} parent=1 // pred_check_branch
      %78 = sbr.rel (0) target = $region53
    $region52: #{tpu_custom_call.1} parent=1 // pred_region
      %79 = dma.done [#allocation6], 512
    $region53: #{tpu_custom_call.1} parent=1 // pred_fallthru
      _
    %v80 = vld [vmem:[#allocation2] sm:$0xff]
    %v81 = vld [vmem:[#allocation2 + $0x8] sm:$0xff]
    %v82 = vld [vmem:[#allocation5] sm:$0xff]
    %v83 = vld [vmem:[#allocation5 + $0x8] sm:$0xff]
    %v84 = vld [vmem:[#allocation5 + $0x10] sm:$0xff]
    %v85 = vld [vmem:[#allocation5 + $0x18] sm:$0xff]
    %v86 = vld [vmem:[%s3] sm:$0x1]
    %v88 = vlaneseq
    %v89 = vshrl.u32 %v88, 7
    %v90 = vsub.s32 0, %v89
    %v91 = vrot.slane %v86, %v90
    %vm93 = vcmask 261120
    %v95 = vsel %vm93, %v80, 0
    %v98 = vsel %vm93, %v81, 0
    %100 = vmatprep.subr.mxu0 0.0
    %101 = vmatpush1.msra.mxu0 %v82
    %102 = vmatprep.subr.mxu0 0.0
    %103 = vmatpush1.msra.mxu0 %v83
    %104 = vmatprep.subr.mxu0 0.0
    %105 = vmatpush1.msra.mxu0 %v84
    %106 = vmatprep.subr.mxu0 0.0
    %107 = vmatpush1.msra.mxu0 %v85
    %108 = vmatprep.subr.mxu0 0.0
    %109 = vmatpush1.msra.mxu0 0.0
    %110 = vmatprep.subr.mxu0 0.0
    %111 = vmatpush1.msra.mxu0 0.0
    %112 = vmatprep.subr.mxu0 0.0
    %113 = vmatpush1.msra.mxu0 0.0
    %114 = vmatprep.subr.mxu0 0.0
    %115 = vmatpush1.msra.mxu0 0.0
    %116 = vmatprep.subr.mxu0 0.0
    %117 = vmatpush1.msra.mxu0 0.0
    %118 = vmatprep.subr.mxu0 0.0
    %119 = vmatpush1.msra.mxu0 0.0
    %120 = vmatprep.subr.mxu0 0.0
    %121 = vmatpush1.msra.mxu0 0.0
    %122 = vmatprep.subr.mxu0 0.0
    %123 = vmatpush1.msra.mxu0 0.0
    %124 = vmatprep.subr.mxu0 0.0
    %125 = vmatpush1.msra.mxu0 0.0
    %126 = vmatprep.subr.mxu0 0.0
    %127 = vmatpush1.msra.mxu0 0.0
    %128 = vmatprep.subr.mxu0 0.0
    %129 = vmatpush1.msra.mxu0 0.0
    %130 = vmatprep.subr.mxu0 0.0
    %131 = vmatpush1.msra.mxu0 0.0
    %132 = vmatprep.subr.mxu0 0.0
    %133 = vmatpush1.msra.mxu0 0.0
    %134 = vmatprep.subr.mxu0 0.0
    %135 = vmatpush1.msra.mxu0 0.0
    %136 = vmatprep.subr.mxu0 0.0
    %137 = vmatpush1.msra.mxu0 0.0
    %138 = vmatprep.subr.mxu0 0.0
    %139 = vmatpush1.msra.mxu0 0.0
    %140 = vmatprep.subr.mxu0 0.0
    %141 = vmatpush1.msra.mxu0 0.0
    %142 = vmatprep.subr.mxu0 0.0
    %143 = vmatpush1.msra.mxu0 0.0
    %144 = vmatprep.subr.mxu0 0.0
    %145 = vmatpush1.msra.mxu0 0.0
    %146 = vmatprep.subr.mxu0 0.0
    %147 = vmatpush1.msra.mxu0 0.0
    %148 = vmatprep.subr.mxu0 0.0
    %149 = vmatpush1.msra.mxu0 0.0
    %150 = vmatprep.subr.mxu0 0.0
    %151 = vmatpush1.msra.mxu0 0.0
    %152 = vmatprep.subr.mxu0 0.0
    %153 = vmatpush1.msra.mxu0 0.0
    %154 = vmatprep.subr.mxu0 0.0
    %155 = vmatpush1.msra.mxu0 0.0
    %156 = vmatprep.subr.mxu0 0.0
    %157 = vmatpush1.msra.mxu0 0.0
    %158 = vmatprep.subr.mxu0 0.0
    %159 = vmatpush1.msra.mxu0 0.0
    %160 = vmatprep.subr.mxu0 0.0
    %161 = vmatpush1.msra.mxu0 0.0
    %162 = vmatprep.subr.mxu0 0.0
    %163 = vmatpush1.msra.mxu0 0.0
    %164 = vmatprep.mubr.f32.mxu0 0.0
    %165 = vmatmul.mubr.f32.gmra.mrb[0].mxu0 %v95
    %v166 = vpop.f32.mrb[0].mxu0
    %v167 = vadd.f32 %v91, %v166
    %v168 = vpop.f32.mrb[0].mxu0
    %169 = vmatprep.mubr.f32.mxu0 0.0
    %170 = vmatmul.mubr.f32.gmra.mrb[0].mxu0 %v98
    %v171 = vpop.f32.mrb[0].mxu0
    %v172 = vadd.f32 %v91, %v171
    %v173 = vpop.f32.mrb[0].mxu0
    %174 = vdwg.mxu0
    %v175 = vld [vmem:[%s1] sm:$0xff]
    %v176 = vld [vmem:[%s1 + $0x8] sm:$0xff]
    %v177 = vld [vmem:[%s1 + $0x10] sm:$0xff]
    %v178 = vld [vmem:[%s1 + $0x18] sm:$0xff]
    %179 = vmatprep.subr.mxu0 0.0
    %180 = vmatpush1.msra.mxu0 %v175
    %181 = vmatprep.subr.mxu0 0.0
    %182 = vmatpush1.msra.mxu0 %v176
    %183 = vmatprep.subr.mxu0 0.0
    %184 = vmatpush1.msra.mxu0 %v177
    %185 = vmatprep.subr.mxu0 0.0
    %186 = vmatpush1.msra.mxu0 %v178
    %187 = vmatprep.subr.mxu0 0.0
    %188 = vmatpush1.msra.mxu0 0.0
    %189 = vmatprep.subr.mxu0 0.0
    %190 = vmatpush1.msra.mxu0 0.0
    %191 = vmatprep.subr.mxu0 0.0
    %192 = vmatpush1.msra.mxu0 0.0
    %193 = vmatprep.subr.mxu0 0.0
    %194 = vmatpush1.msra.mxu0 0.0
    %195 = vmatprep.subr.mxu0 0.0
    %196 = vmatpush1.msra.mxu0 0.0
    %197 = vmatprep.subr.mxu0 0.0
    %198 = vmatpush1.msra.mxu0 0.0
    %199 = vmatprep.subr.mxu0 0.0
    %200 = vmatpush1.msra.mxu0 0.0
    %201 = vmatprep.subr.mxu0 0.0
    %202 = vmatpush1.msra.mxu0 0.0
    %203 = vmatprep.subr.mxu0 0.0
    %204 = vmatpush1.msra.mxu0 0.0
    %205 = vmatprep.subr.mxu0 0.0
    %206 = vmatpush1.msra.mxu0 0.0
    %207 = vmatprep.subr.mxu0 0.0
    %208 = vmatpush1.msra.mxu0 0.0
    %209 = vmatprep.subr.mxu0 0.0
    %210 = vmatpush1.msra.mxu0 0.0
    %211 = vmatprep.subr.mxu0 0.0
    %212 = vmatpush1.msra.mxu0 0.0
    %213 = vmatprep.subr.mxu0 0.0
    %214 = vmatpush1.msra.mxu0 0.0
    %215 = vmatprep.subr.mxu0 0.0
    %216 = vmatpush1.msra.mxu0 0.0
    %217 = vmatprep.subr.mxu0 0.0
    %218 = vmatpush1.msra.mxu0 0.0
    %219 = vmatprep.subr.mxu0 0.0
    %220 = vmatpush1.msra.mxu0 0.0
    %221 = vmatprep.subr.mxu0 0.0
    %222 = vmatpush1.msra.mxu0 0.0
    %223 = vmatprep.subr.mxu0 0.0
    %224 = vmatpush1.msra.mxu0 0.0
    %225 = vmatprep.subr.mxu0 0.0
    %226 = vmatpush1.msra.mxu0 0.0
    %227 = vmatprep.subr.mxu0 0.0
    %228 = vmatpush1.msra.mxu0 0.0
    %229 = vmatprep.subr.mxu0 0.0
    %230 = vmatpush1.msra.mxu0 0.0
    %231 = vmatprep.subr.mxu0 0.0
    %232 = vmatpush1.msra.mxu0 0.0
    %233 = vmatprep.subr.mxu0 0.0
    %234 = vmatpush1.msra.mxu0 0.0
    %235 = vmatprep.subr.mxu0 0.0
    %236 = vmatpush1.msra.mxu0 0.0
    %237 = vmatprep.subr.mxu0 0.0
    %238 = vmatpush1.msra.mxu0 0.0
    %239 = vmatprep.subr.mxu0 0.0
    %240 = vmatpush1.msra.mxu0 0.0
    %241 = vmatprep.subr.mxu0 0.0
    %242 = vmatpush1.msra.mxu0 0.0
    %243 = vmatprep.mubr.f32.mxu0 0.0
    %244 = vmatmul.mubr.f32.gmra.mrb[0].mxu0 %v95
    %v245 = vpop.f32.mrb[0].mxu0
    %v246 = vadd.f32 0.0, %v245
    %v247 = vpop.f32.mrb[0].mxu0
    %248 = vmatprep.mubr.f32.mxu0 0.0
    %249 = vmatmul.mubr.f32.gmra.mrb[0].mxu0 %v98
    %v250 = vpop.f32.mrb[0].mxu0
    %v251 = vadd.f32 0.0, %v250
    %v252 = vpop.f32.mrb[0].mxu0
    %253 = vdwg.mxu0
    %v256 = vcombine.high %v246, %v246
    %v258 = vunpack.c.l.s4 1966171168
    %v259 = vunpack.c.0.s8 %v258
    %v260 = vlaneseq
    %v261 = vshrl.u32 %v260, 7
    %v262 = vsub.s32 %v259, %v261
    %v263 = vrot.slane %v246, %v262
    %v265 = vunpack.c.l.s4 1966171168
    %v266 = vunpack.c.0.s8 %v265
    %v267 = vlaneseq
    %v268 = vshrl.u32 %v267, 7
    %v269 = vsub.s32 %v266, %v268
    %v270 = vrot.slane %v256, %v269
    %v271 = vcombine.high %v263, %v263
    %v272 = vcombine.high %v270, %v270
    %v274 = vunpack.c.l.s4 1966171168
    %v275 = vunpack.c.0.s8 %v274
    %v276 = vlaneseq
    %v277 = vshrl.u32 %v276, 7
    %v278 = vsub.s32 %v275, %v277
    %v279 = vrot.slane %v263, %v278
    %v281 = vunpack.c.l.s4 1966171168
    %v282 = vunpack.c.0.s8 %v281
    %v283 = vlaneseq
    %v284 = vshrl.u32 %v283, 7
    %v285 = vsub.s32 %v282, %v284
    %v286 = vrot.slane %v270, %v285
    %v288 = vunpack.c.l.s4 1966171168
    %v289 = vunpack.c.0.s8 %v288
    %v290 = vlaneseq
    %v291 = vshrl.u32 %v290, 7
    %v292 = vsub.s32 %v289, %v291
    %v293 = vrot.slane %v271, %v292
    %v295 = vunpack.c.l.s4 1966171168
    %v296 = vunpack.c.0.s8 %v295
    %v297 = vlaneseq
    %v298 = vshrl.u32 %v297, 7
    %v299 = vsub.s32 %v296, %v298
    %v300 = vrot.slane %v272, %v299
    %v301 = vcombine.high %v279, %v279
    %v302 = vcombine.high %v286, %v286
    %v303 = vcombine.high %v293, %v293
    %v304 = vcombine.high %v300, %v300
    %v305 = vcombine.high %v251, %v251
    %v307 = vunpack.c.l.s4 1966171168
    %v308 = vunpack.c.0.s8 %v307
    %v309 = vlaneseq
    %v310 = vshrl.u32 %v309, 7
    %v311 = vsub.s32 %v308, %v310
    %v312 = vrot.slane %v251, %v311
    %v314 = vunpack.c.l.s4 1966171168
    %v315 = vunpack.c.0.s8 %v314
    %v316 = vlaneseq
    %v317 = vshrl.u32 %v316, 7
    %v318 = vsub.s32 %v315, %v317
    %v319 = vrot.slane %v305, %v318
    %v320 = vcombine.high %v312, %v312
    %v321 = vcombine.high %v319, %v319
    %v323 = vunpack.c.l.s4 1966171168
    %v324 = vunpack.c.0.s8 %v323
    %v325 = vlaneseq
    %v326 = vshrl.u32 %v325, 7
    %v327 = vsub.s32 %v324, %v326
    %v328 = vrot.slane %v312, %v327
    %v330 = vunpack.c.l.s4 1966171168
    %v331 = vunpack.c.0.s8 %v330
    %v332 = vlaneseq
    %v333 = vshrl.u32 %v332, 7
    %v334 = vsub.s32 %v331, %v333
    %v335 = vrot.slane %v319, %v334
    %v337 = vunpack.c.l.s4 1966171168
    %v338 = vunpack.c.0.s8 %v337
    %v339 = vlaneseq
    %v340 = vshrl.u32 %v339, 7
    %v341 = vsub.s32 %v338, %v340
    %v342 = vrot.slane %v320, %v341
    %v344 = vunpack.c.l.s4 1966171168
    %v345 = vunpack.c.0.s8 %v344
    %v346 = vlaneseq
    %v347 = vshrl.u32 %v346, 7
    %v348 = vsub.s32 %v345, %v347
    %v349 = vrot.slane %v321, %v348
    %v350 = vcombine.high %v328, %v328
    %v351 = vcombine.high %v335, %v335
    %v352 = vcombine.high %v342, %v342
    %v353 = vcombine.high %v349, %v349
    %v354 = vlaneseq
    %v355 = vshrl.u32 %v354, 7
    %v356 = vsub.s32 0, %v355
    %v357 = vrot.slane %v279, %v356
    %v358 = vlaneseq
    %v359 = vshrl.u32 %v358, 7
    %v360 = vsub.s32 0, %v359
    %v361 = vrot.slane %v293, %v360
    %v362 = vlaneseq
    %v363 = vshrl.u32 %v362, 7
    %v364 = vsub.s32 0, %v363
    %v365 = vrot.slane %v301, %v364
    %v366 = vlaneseq
    %v367 = vshrl.u32 %v366, 7
    %v368 = vsub.s32 0, %v367
    %v369 = vrot.slane %v303, %v368
    %v370 = vlaneseq
    %v371 = vshrl.u32 %v370, 7
    %v372 = vsub.s32 0, %v371
    %v373 = vrot.slane %v286, %v372
    %v374 = vlaneseq
    %v375 = vshrl.u32 %v374, 7
    %v376 = vsub.s32 0, %v375
    %v377 = vrot.slane %v300, %v376
    %v378 = vlaneseq
    %v379 = vshrl.u32 %v378, 7
    %v380 = vsub.s32 0, %v379
    %v381 = vrot.slane %v302, %v380
    %v382 = vlaneseq
    %v383 = vshrl.u32 %v382, 7
    %v384 = vsub.s32 0, %v383
    %v385 = vrot.slane %v304, %v384
    %v386 = vlaneseq
    %v387 = vshrl.u32 %v386, 7
    %v388 = vsub.s32 0, %v387
    %v389 = vrot.slane %v328, %v388
    %v390 = vlaneseq
    %v391 = vshrl.u32 %v390, 7
    %v392 = vsub.s32 0, %v391
    %v393 = vrot.slane %v342, %v392
    %v394 = vlaneseq
    %v395 = vshrl.u32 %v394, 7
    %v396 = vsub.s32 0, %v395
    %v397 = vrot.slane %v350, %v396
    %v398 = vlaneseq
    %v399 = vshrl.u32 %v398, 7
    %v400 = vsub.s32 0, %v399
    %v401 = vrot.slane %v352, %v400
    %v402 = vlaneseq
    %v403 = vshrl.u32 %v402, 7
    %v404 = vsub.s32 0, %v403
    %v405 = vrot.slane %v335, %v404
    %v406 = vlaneseq
    %v407 = vshrl.u32 %v406, 7
    %v408 = vsub.s32 0, %v407
    %v409 = vrot.slane %v349, %v408
    %v410 = vlaneseq
    %v411 = vshrl.u32 %v410, 7
    %v412 = vsub.s32 0, %v411
    %v413 = vrot.slane %v351, %v412
    %v414 = vlaneseq
    %v415 = vshrl.u32 %v414, 7
    %v416 = vsub.s32 0, %v415
    %v417 = vrot.slane %v353, %v416
    %v434 = vadd.f32 %v357, %v167
    %v435 = vadd.f32 %v361, %v167
    %v436 = vadd.f32 %v365, %v167
    %v437 = vadd.f32 %v369, %v167
    %v438 = vadd.f32 %v373, %v167
    %v439 = vadd.f32 %v377, %v167
    %v440 = vadd.f32 %v381, %v167
    %v441 = vadd.f32 %v385, %v167
    %v442 = vadd.f32 %v389, %v172
    %v443 = vadd.f32 %v393, %v172
    %v444 = vadd.f32 %v397, %v172
    %v445 = vadd.f32 %v401, %v172
    %v446 = vadd.f32 %v405, %v172
    %v447 = vadd.f32 %v409, %v172
    %v448 = vadd.f32 %v413, %v172
    %v449 = vadd.f32 %v417, %v172
    %v450 = vmax.f32 %v434, 0.0
    %v451 = vmax.f32 %v435, 0.0
    %v452 = vmax.f32 %v436, 0.0
    %v453 = vmax.f32 %v437, 0.0
    %v454 = vmax.f32 %v438, 0.0
    %v455 = vmax.f32 %v439, 0.0
    %v456 = vmax.f32 %v440, 0.0
    %v457 = vmax.f32 %v441, 0.0
    %v458 = vmax.f32 %v442, 0.0
    %v459 = vmax.f32 %v443, 0.0
    %v460 = vmax.f32 %v444, 0.0
    %v461 = vmax.f32 %v445, 0.0
    %v462 = vmax.f32 %v446, 0.0
    %v463 = vmax.f32 %v447, 0.0
    %v464 = vmax.f32 %v448, 0.0
    %v465 = vmax.f32 %v449, 0.0
    %v466 = vld [vmem:[%s4] sm:$0x1]
    %v468 = vlaneseq
    %v469 = vshrl.u32 %v468, 7
    %v470 = vsub.s32 0, %v469
    %v471 = vrot.slane %v466, %v470
    %v473 = vmul.f32 %v450, %v471
    %v474 = vmul.f32 %v451, %v471
    %v475 = vmul.f32 %v452, %v471
    %v476 = vmul.f32 %v453, %v471
    %v477 = vmul.f32 %v454, %v471
    %v478 = vmul.f32 %v455, %v471
    %v479 = vmul.f32 %v456, %v471
    %v480 = vmul.f32 %v457, %v471
    %v481 = vmul.f32 %v458, %v471
    %v482 = vmul.f32 %v459, %v471
    %v483 = vmul.f32 %v460, %v471
    %v484 = vmul.f32 %v461, %v471
    %v485 = vmul.f32 %v462, %v471
    %v486 = vmul.f32 %v463, %v471
    %v487 = vmul.f32 %v464, %v471
    %v488 = vmul.f32 %v465, %v471
    %v489 = vsel %vm93, %v473, 0.0
    %490 = vadd.xlane.f32.xlu0 %v489
    %v491 = vpop.xlane.xlu0 %490
    %v492 = vsel %vm93, %v474, 0.0
    %493 = vadd.xlane.f32.xlu0 %v492
    %v494 = vpop.xlane.xlu0 %493
    %v495 = vsel %vm93, %v475, 0.0
    %496 = vadd.xlane.f32.xlu0 %v495
    %v497 = vpop.xlane.xlu0 %496
    %v498 = vsel %vm93, %v476, 0.0
    %499 = vadd.xlane.f32.xlu0 %v498
    %v500 = vpop.xlane.xlu0 %499
    %v501 = vsel %vm93, %v477, 0.0
    %502 = vadd.xlane.f32.xlu0 %v501
    %v503 = vpop.xlane.xlu0 %502
    %v504 = vsel %vm93, %v478, 0.0
    %505 = vadd.xlane.f32.xlu0 %v504
    %v506 = vpop.xlane.xlu0 %505
    %v507 = vsel %vm93, %v479, 0.0
    %508 = vadd.xlane.f32.xlu0 %v507
    %v509 = vpop.xlane.xlu0 %508
    %v510 = vsel %vm93, %v480, 0.0
    %511 = vadd.xlane.f32.xlu0 %v510
    %v512 = vpop.xlane.xlu0 %511
    %v513 = vsel %vm93, %v481, 0.0
    %514 = vadd.xlane.f32.xlu0 %v513
    %v515 = vpop.xlane.xlu0 %514
    %v516 = vsel %vm93, %v482, 0.0
    %517 = vadd.xlane.f32.xlu0 %v516
    %v518 = vpop.xlane.xlu0 %517
    %v519 = vsel %vm93, %v483, 0.0
    %520 = vadd.xlane.f32.xlu0 %v519
    %v521 = vpop.xlane.xlu0 %520
    %v522 = vsel %vm93, %v484, 0.0
    %523 = vadd.xlane.f32.xlu0 %v522
    %v524 = vpop.xlane.xlu0 %523
    %v525 = vsel %vm93, %v485, 0.0
    %526 = vadd.xlane.f32.xlu0 %v525
    %v527 = vpop.xlane.xlu0 %526
    %v528 = vsel %vm93, %v486, 0.0
    %529 = vadd.xlane.f32.xlu0 %v528
    %v530 = vpop.xlane.xlu0 %529
    %v531 = vsel %vm93, %v487, 0.0
    %532 = vadd.xlane.f32.xlu0 %v531
    %v533 = vpop.xlane.xlu0 %532
    %v534 = vsel %vm93, %v488, 0.0
    %535 = vadd.xlane.f32.xlu0 %v534
    %v536 = vpop.xlane.xlu0 %535
    %v553 = vlaneseq
    %v554 = vand.u32 %v553, 127
    %v555 = vlaneseq
    %v556 = vshrl.u32 %v555, 7
    %v557 = vsub.s32 %v554, %v556
    %v558 = vrot.slane %v491, %v557
    %v559 = vlaneseq
    %v560 = vshrl.u32 %v559, 7
    %v561 = vsub.s32 %v554, %v560
    %v562 = vrot.slane %v494, %v561
    %v563 = vlaneseq
    %v564 = vshrl.u32 %v563, 7
    %v565 = vsub.s32 %v554, %v564
    %v566 = vrot.slane %v497, %v565
    %v567 = vlaneseq
    %v568 = vshrl.u32 %v567, 7
    %v569 = vsub.s32 %v554, %v568
    %v570 = vrot.slane %v500, %v569
    %v571 = vlaneseq
    %v572 = vshrl.u32 %v571, 7
    %v573 = vsub.s32 %v554, %v572
    %v574 = vrot.slane %v503, %v573
    %v575 = vlaneseq
    %v576 = vshrl.u32 %v575, 7
    %v577 = vsub.s32 %v554, %v576
    %v578 = vrot.slane %v506, %v577
    %v579 = vlaneseq
    %v580 = vshrl.u32 %v579, 7
    %v581 = vsub.s32 %v554, %v580
    %v582 = vrot.slane %v509, %v581
    %v583 = vlaneseq
    %v584 = vshrl.u32 %v583, 7
    %v585 = vsub.s32 %v554, %v584
    %v586 = vrot.slane %v512, %v585
    %v587 = vlaneseq
    %v588 = vshrl.u32 %v587, 7
    %v589 = vsub.s32 %v554, %v588
    %v590 = vrot.slane %v515, %v589
    %v591 = vlaneseq
    %v592 = vshrl.u32 %v591, 7
    %v593 = vsub.s32 %v554, %v592
    %v594 = vrot.slane %v518, %v593
    %v595 = vlaneseq
    %v596 = vshrl.u32 %v595, 7
    %v597 = vsub.s32 %v554, %v596
    %v598 = vrot.slane %v521, %v597
    %v599 = vlaneseq
    %v600 = vshrl.u32 %v599, 7
    %v601 = vsub.s32 %v554, %v600
    %v602 = vrot.slane %v524, %v601
    %v603 = vlaneseq
    %v604 = vshrl.u32 %v603, 7
    %v605 = vsub.s32 %v554, %v604
    %v606 = vrot.slane %v527, %v605
    %v607 = vlaneseq
    %v608 = vshrl.u32 %v607, 7
    %v609 = vsub.s32 %v554, %v608
    %v610 = vrot.slane %v530, %v609
    %v611 = vlaneseq
    %v612 = vshrl.u32 %v611, 7
    %v613 = vsub.s32 %v554, %v612
    %v614 = vrot.slane %v533, %v613
    %v615 = vlaneseq
    %v616 = vshrl.u32 %v615, 7
    %v617 = vsub.s32 %v554, %v616
    %v618 = vrot.slane %v536, %v617
    %vm619 = vcmask 1041409
    %v620 = vsel %vm619, %v562, %v558
    %vm621 = vcmask 1042434
    %v622 = vsel %vm621, %v566, %v620
    %vm623 = vcmask 1043459
    %v624 = vsel %vm623, %v570, %v622
    %vm625 = vcmask 1044484
    %v626 = vsel %vm625, %v574, %v624
    %vm627 = vcmask 1045509
    %v628 = vsel %vm627, %v578, %v626
    %vm629 = vcmask 1046534
    %v630 = vsel %vm629, %v582, %v628
    %vm631 = vcmask 1047559
    %v632 = vsel %vm631, %v586, %v630
    %v633 = vsel %vm619, %v594, %v590
    %v634 = vsel %vm621, %v598, %v633
    %v635 = vsel %vm623, %v602, %v634
    %v636 = vsel %vm625, %v606, %v635
    %v637 = vsel %vm627, %v610, %v636
    %v638 = vsel %vm629, %v614, %v637
    %v639 = vsel %vm631, %v618, %v638
    %vm642 = vcmask 64512
    %v643 = vsel %vm642, %v632, -inf
    %644 = vmax.xlane.f32.xlu0 %v643
    %v645 = vpop.xlane.xlu0 %644
    %v646 = vsel %vm642, %v639, -inf
    %647 = vmax.xlane.f32.xlu0 %v646
    %v648 = vpop.xlane.xlu0 %647
    %v651 = vlaneseq
    %v652 = vshrl.u32 %v651, 7
    %v653 = vsub.s32 0, %v652
    %v654 = vrot.slane %v645, %v653
    %v655 = vlaneseq
    %v656 = vshrl.u32 %v655, 7
    %v657 = vsub.s32 1, %v656
    %v658 = vrot.slane %v645, %v657
    %v659 = vlaneseq
    %v660 = vshrl.u32 %v659, 7
    %v661 = vsub.s32 2, %v660
    %v662 = vrot.slane %v645, %v661
    %v663 = vlaneseq
    %v664 = vshrl.u32 %v663, 7
    %v665 = vsub.s32 3, %v664
    %v666 = vrot.slane %v645, %v665
    %v667 = vlaneseq
    %v668 = vshrl.u32 %v667, 7
    %v669 = vsub.s32 4, %v668
    %v670 = vrot.slane %v645, %v669
    %v671 = vlaneseq
    %v672 = vshrl.u32 %v671, 7
    %v673 = vsub.s32 5, %v672
    %v674 = vrot.slane %v645, %v673
    %v675 = vlaneseq
    %v676 = vshrl.u32 %v675, 7
    %v677 = vsub.s32 6, %v676
    %v678 = vrot.slane %v645, %v677
    %v679 = vlaneseq
    %v680 = vshrl.u32 %v679, 7
    %v681 = vsub.s32 7, %v680
    %v682 = vrot.slane %v645, %v681
    %v683 = vlaneseq
    %v684 = vshrl.u32 %v683, 7
    %v685 = vsub.s32 0, %v684
    %v686 = vrot.slane %v648, %v685
    %v687 = vlaneseq
    %v688 = vshrl.u32 %v687, 7
    %v689 = vsub.s32 1, %v688
    %v690 = vrot.slane %v648, %v689
    %v691 = vlaneseq
    %v692 = vshrl.u32 %v691, 7
    %v693 = vsub.s32 2, %v692
    %v694 = vrot.slane %v648, %v693
    %v695 = vlaneseq
    %v696 = vshrl.u32 %v695, 7
    %v697 = vsub.s32 3, %v696
    %v698 = vrot.slane %v648, %v697
    %v699 = vlaneseq
    %v700 = vshrl.u32 %v699, 7
    %v701 = vsub.s32 4, %v700
    %v702 = vrot.slane %v648, %v701
    %v703 = vlaneseq
    %v704 = vshrl.u32 %v703, 7
    %v705 = vsub.s32 5, %v704
    %v706 = vrot.slane %v648, %v705
    %v707 = vlaneseq
    %v708 = vshrl.u32 %v707, 7
    %v709 = vsub.s32 6, %v708
    %v710 = vrot.slane %v648, %v709
    %v711 = vlaneseq
    %v712 = vshrl.u32 %v711, 7
    %v713 = vsub.s32 7, %v712
    %v714 = vrot.slane %v648, %v713
    %v731 = vsub.f32 %v491, %v654
    %v732 = vsub.f32 %v494, %v658
    %v733 = vsub.f32 %v497, %v662
    %v734 = vsub.f32 %v500, %v666
    %v735 = vsub.f32 %v503, %v670
    %v736 = vsub.f32 %v506, %v674
    %v737 = vsub.f32 %v509, %v678
    %v738 = vsub.f32 %v512, %v682
    %v739 = vsub.f32 %v515, %v686
    %v740 = vsub.f32 %v518, %v690
    %v741 = vsub.f32 %v521, %v694
    %v742 = vsub.f32 %v524, %v698
    %v743 = vsub.f32 %v527, %v702
    %v744 = vsub.f32 %v530, %v706
    %v745 = vsub.f32 %v533, %v710
    %v746 = vsub.f32 %v536, %v714
    %v747 = vmul.f32 %v731, 1.442695
    %v748 = vpow.pop %v747
    %v749 = vmul.f32 %v732, 1.442695
    %v750 = vpow.pop %v749
    %v751 = vmul.f32 %v733, 1.442695
    %v752 = vpow.pop %v751
    %v753 = vmul.f32 %v734, 1.442695
    %v754 = vpow.pop %v753
    %v755 = vmul.f32 %v735, 1.442695
    %v756 = vpow.pop %v755
    %v757 = vmul.f32 %v736, 1.442695
    %v758 = vpow.pop %v757
    %v759 = vmul.f32 %v737, 1.442695
    %v760 = vpow.pop %v759
    %v761 = vmul.f32 %v738, 1.442695
    %v762 = vpow.pop %v761
    %v763 = vmul.f32 %v739, 1.442695
    %v764 = vpow.pop %v763
    %v765 = vmul.f32 %v740, 1.442695
    %v766 = vpow.pop %v765
    %v767 = vmul.f32 %v741, 1.442695
    %v768 = vpow.pop %v767
    %v769 = vmul.f32 %v742, 1.442695
    %v770 = vpow.pop %v769
    %v771 = vmul.f32 %v743, 1.442695
    %v772 = vpow.pop %v771
    %v773 = vmul.f32 %v744, 1.442695
    %v774 = vpow.pop %v773
    %v775 = vmul.f32 %v745, 1.442695
    %v776 = vpow.pop %v775
    %v777 = vmul.f32 %v746, 1.442695
    %v778 = vpow.pop %v777
    %795 = vset.pattern.permute.xlu0 0
    %796 = vperm.xlu0 %795, %v748
    %v797 = vpop.permute.xlu0 %796
    %798 = vset.pattern.permute.xlu0 0
    %799 = vperm.xlu0 %798, %v750
    %v800 = vpop.permute.xlu0 %799
    %801 = vset.pattern.permute.xlu0 0
    %802 = vperm.xlu0 %801, %v752
    %v803 = vpop.permute.xlu0 %802
    %804 = vset.pattern.permute.xlu0 0
    %805 = vperm.xlu0 %804, %v754
    %v806 = vpop.permute.xlu0 %805
    %807 = vset.pattern.permute.xlu0 0
    %808 = vperm.xlu0 %807, %v756
    %v809 = vpop.permute.xlu0 %808
    %810 = vset.pattern.permute.xlu0 0
    %811 = vperm.xlu0 %810, %v758
    %v812 = vpop.permute.xlu0 %811
    %813 = vset.pattern.permute.xlu0 0
    %814 = vperm.xlu0 %813, %v760
    %v815 = vpop.permute.xlu0 %814
    %816 = vset.pattern.permute.xlu0 0
    %817 = vperm.xlu0 %816, %v762
    %v818 = vpop.permute.xlu0 %817
    %819 = vset.pattern.permute.xlu0 0
    %820 = vperm.xlu0 %819, %v764
    %v821 = vpop.permute.xlu0 %820
    %822 = vset.pattern.permute.xlu0 0
    %823 = vperm.xlu0 %822, %v766
    %v824 = vpop.permute.xlu0 %823
    %825 = vset.pattern.permute.xlu0 0
    %826 = vperm.xlu0 %825, %v768
    %v827 = vpop.permute.xlu0 %826
    %828 = vset.pattern.permute.xlu0 0
    %829 = vperm.xlu0 %828, %v770
    %v830 = vpop.permute.xlu0 %829
    %831 = vset.pattern.permute.xlu0 0
    %832 = vperm.xlu0 %831, %v772
    %v833 = vpop.permute.xlu0 %832
    %834 = vset.pattern.permute.xlu0 0
    %835 = vperm.xlu0 %834, %v774
    %v836 = vpop.permute.xlu0 %835
    %837 = vset.pattern.permute.xlu0 0
    %838 = vperm.xlu0 %837, %v776
    %v839 = vpop.permute.xlu0 %838
    %840 = vset.pattern.permute.xlu0 0
    %841 = vperm.xlu0 %840, %v778
    %v842 = vpop.permute.xlu0 %841
    %v843 = vlaneseq
    %v844 = vshrl.u32 %v843, 7
    %v845 = vsub.s32 %v554, %v844
    %v846 = vrot.slane %v797, %v845
    %v847 = vlaneseq
    %v848 = vshrl.u32 %v847, 7
    %v849 = vsub.s32 %v554, %v848
    %v850 = vrot.slane %v800, %v849
    %v851 = vlaneseq
    %v852 = vshrl.u32 %v851, 7
    %v853 = vsub.s32 %v554, %v852
    %v854 = vrot.slane %v803, %v853
    %v855 = vlaneseq
    %v856 = vshrl.u32 %v855, 7
    %v857 = vsub.s32 %v554, %v856
    %v858 = vrot.slane %v806, %v857
    %v859 = vlaneseq
    %v860 = vshrl.u32 %v859, 7
    %v861 = vsub.s32 %v554, %v860
    %v862 = vrot.slane %v809, %v861
    %v863 = vlaneseq
    %v864 = vshrl.u32 %v863, 7
    %v865 = vsub.s32 %v554, %v864
    %v866 = vrot.slane %v812, %v865
    %v867 = vlaneseq
    %v868 = vshrl.u32 %v867, 7
    %v869 = vsub.s32 %v554, %v868
    %v870 = vrot.slane %v815, %v869
    %v871 = vlaneseq
    %v872 = vshrl.u32 %v871, 7
    %v873 = vsub.s32 %v554, %v872
    %v874 = vrot.slane %v818, %v873
    %v875 = vlaneseq
    %v876 = vshrl.u32 %v875, 7
    %v877 = vsub.s32 %v554, %v876
    %v878 = vrot.slane %v821, %v877
    %v879 = vlaneseq
    %v880 = vshrl.u32 %v879, 7
    %v881 = vsub.s32 %v554, %v880
    %v882 = vrot.slane %v824, %v881
    %v883 = vlaneseq
    %v884 = vshrl.u32 %v883, 7
    %v885 = vsub.s32 %v554, %v884
    %v886 = vrot.slane %v827, %v885
    %v887 = vlaneseq
    %v888 = vshrl.u32 %v887, 7
    %v889 = vsub.s32 %v554, %v888
    %v890 = vrot.slane %v830, %v889
    %v891 = vlaneseq
    %v892 = vshrl.u32 %v891, 7
    %v893 = vsub.s32 %v554, %v892
    %v894 = vrot.slane %v833, %v893
    %v895 = vlaneseq
    %v896 = vshrl.u32 %v895, 7
    %v897 = vsub.s32 %v554, %v896
    %v898 = vrot.slane %v836, %v897
    %v899 = vlaneseq
    %v900 = vshrl.u32 %v899, 7
    %v901 = vsub.s32 %v554, %v900
    %v902 = vrot.slane %v839, %v901
    %v903 = vlaneseq
    %v904 = vshrl.u32 %v903, 7
    %v905 = vsub.s32 %v554, %v904
    %v906 = vrot.slane %v842, %v905
    %v907 = vsel %vm619, %v850, %v846
    %v908 = vsel %vm621, %v854, %v907
    %v909 = vsel %vm623, %v858, %v908
    %v910 = vsel %vm625, %v862, %v909
    %v911 = vsel %vm627, %v866, %v910
    %v912 = vsel %vm629, %v870, %v911
    %v913 = vsel %vm631, %v874, %v912
    %v914 = vsel %vm619, %v882, %v878
    %v915 = vsel %vm621, %v886, %v914
    %v916 = vsel %vm623, %v890, %v915
    %v917 = vsel %vm625, %v894, %v916
    %v918 = vsel %vm627, %v898, %v917
    %v919 = vsel %vm629, %v902, %v918
    %v920 = vsel %vm631, %v906, %v919
    %v923 = vsel %vm642, %v913, 0.0
    %924 = vadd.xlane.f32.xlu0 %v923
    %v925 = vpop.xlane.xlu0 %924
    %v926 = vsel %vm642, %v920, 0.0
    %927 = vadd.xlane.f32.xlu0 %v926
    %v928 = vpop.xlane.xlu0 %927
    %v929 = vrcp.pop %v925
    %v930 = vrcp.pop %v928
    %v933 = vlaneseq
    %v934 = vshrl.u32 %v933, 7
    %v935 = vsub.s32 0, %v934
    %v936 = vrot.slane %v929, %v935
    %v937 = vlaneseq
    %v938 = vshrl.u32 %v937, 7
    %v939 = vsub.s32 1, %v938
    %v940 = vrot.slane %v929, %v939
    %v941 = vlaneseq
    %v942 = vshrl.u32 %v941, 7
    %v943 = vsub.s32 2, %v942
    %v944 = vrot.slane %v929, %v943
    %v945 = vlaneseq
    %v946 = vshrl.u32 %v945, 7
    %v947 = vsub.s32 3, %v946
    %v948 = vrot.slane %v929, %v947
    %v949 = vlaneseq
    %v950 = vshrl.u32 %v949, 7
    %v951 = vsub.s32 4, %v950
    %v952 = vrot.slane %v929, %v951
    %v953 = vlaneseq
    %v954 = vshrl.u32 %v953, 7
    %v955 = vsub.s32 5, %v954
    %v956 = vrot.slane %v929, %v955
    %v957 = vlaneseq
    %v958 = vshrl.u32 %v957, 7
    %v959 = vsub.s32 6, %v958
    %v960 = vrot.slane %v929, %v959
    %v961 = vlaneseq
    %v962 = vshrl.u32 %v961, 7
    %v963 = vsub.s32 7, %v962
    %v964 = vrot.slane %v929, %v963
    %v965 = vlaneseq
    %v966 = vshrl.u32 %v965, 7
    %v967 = vsub.s32 0, %v966
    %v968 = vrot.slane %v930, %v967
    %v969 = vlaneseq
    %v970 = vshrl.u32 %v969, 7
    %v971 = vsub.s32 1, %v970
    %v972 = vrot.slane %v930, %v971
    %v973 = vlaneseq
    %v974 = vshrl.u32 %v973, 7
    %v975 = vsub.s32 2, %v974
    %v976 = vrot.slane %v930, %v975
    %v977 = vlaneseq
    %v978 = vshrl.u32 %v977, 7
    %v979 = vsub.s32 3, %v978
    %v980 = vrot.slane %v930, %v979
    %v981 = vlaneseq
    %v982 = vshrl.u32 %v981, 7
    %v983 = vsub.s32 4, %v982
    %v984 = vrot.slane %v930, %v983
    %v985 = vlaneseq
    %v986 = vshrl.u32 %v985, 7
    %v987 = vsub.s32 5, %v986
    %v988 = vrot.slane %v930, %v987
    %v989 = vlaneseq
    %v990 = vshrl.u32 %v989, 7
    %v991 = vsub.s32 6, %v990
    %v992 = vrot.slane %v930, %v991
    %v993 = vlaneseq
    %v994 = vshrl.u32 %v993, 7
    %v995 = vsub.s32 7, %v994
    %v996 = vrot.slane %v930, %v995
    %v1013 = vmul.f32 %v748, %v936
    %v1014 = vmul.f32 %v750, %v940
    %v1015 = vmul.f32 %v752, %v944
    %v1016 = vmul.f32 %v754, %v948
    %v1017 = vmul.f32 %v756, %v952
    %v1018 = vmul.f32 %v758, %v956
    %v1019 = vmul.f32 %v760, %v960
    %v1020 = vmul.f32 %v762, %v964
    %v1021 = vmul.f32 %v764, %v968
    %v1022 = vmul.f32 %v766, %v972
    %v1023 = vmul.f32 %v768, %v976
    %v1024 = vmul.f32 %v770, %v980
    %v1025 = vmul.f32 %v772, %v984
    %v1026 = vmul.f32 %v774, %v988
    %v1027 = vmul.f32 %v776, %v992
    %v1028 = vmul.f32 %v778, %v996
    %1037 = vset.pattern.permute.xlu0 0
    %1038 = vperm.xlu0 %1037, %v1013
    %v1039 = vpop.permute.xlu0 %1038
    %1040 = vset.pattern.permute.xlu0 0
    %1041 = vperm.xlu0 %1040, %v1014
    %v1042 = vpop.permute.xlu0 %1041
    %1043 = vset.pattern.permute.xlu0 0
    %1044 = vperm.xlu0 %1043, %v1015
    %v1045 = vpop.permute.xlu0 %1044
    %1046 = vset.pattern.permute.xlu0 0
    %1047 = vperm.xlu0 %1046, %v1016
    %v1048 = vpop.permute.xlu0 %1047
    %1049 = vset.pattern.permute.xlu0 0
    %1050 = vperm.xlu0 %1049, %v1017
    %v1051 = vpop.permute.xlu0 %1050
    %1052 = vset.pattern.permute.xlu0 0
    %1053 = vperm.xlu0 %1052, %v1018
    %v1054 = vpop.permute.xlu0 %1053
    %1055 = vset.pattern.permute.xlu0 0
    %1056 = vperm.xlu0 %1055, %v1019
    %v1057 = vpop.permute.xlu0 %1056
    %1058 = vset.pattern.permute.xlu0 0
    %1059 = vperm.xlu0 %1058, %v1020
    %v1060 = vpop.permute.xlu0 %1059
    %v1061 = vlaneseq
    %v1062 = vshrl.u32 %v1061, 7
    %v1063 = vsub.s32 %v554, %v1062
    %v1064 = vrot.slane %v1039, %v1063
    %v1065 = vlaneseq
    %v1066 = vshrl.u32 %v1065, 7
    %v1067 = vsub.s32 %v554, %v1066
    %v1068 = vrot.slane %v1042, %v1067
    %v1069 = vlaneseq
    %v1070 = vshrl.u32 %v1069, 7
    %v1071 = vsub.s32 %v554, %v1070
    %v1072 = vrot.slane %v1045, %v1071
    %v1073 = vlaneseq
    %v1074 = vshrl.u32 %v1073, 7
    %v1075 = vsub.s32 %v554, %v1074
    %v1076 = vrot.slane %v1048, %v1075
    %v1077 = vlaneseq
    %v1078 = vshrl.u32 %v1077, 7
    %v1079 = vsub.s32 %v554, %v1078
    %v1080 = vrot.slane %v1051, %v1079
    %v1081 = vlaneseq
    %v1082 = vshrl.u32 %v1081, 7
    %v1083 = vsub.s32 %v554, %v1082
    %v1084 = vrot.slane %v1054, %v1083
    %v1085 = vlaneseq
    %v1086 = vshrl.u32 %v1085, 7
    %v1087 = vsub.s32 %v554, %v1086
    %v1088 = vrot.slane %v1057, %v1087
    %v1089 = vlaneseq
    %v1090 = vshrl.u32 %v1089, 7
    %v1091 = vsub.s32 %v554, %v1090
    %v1092 = vrot.slane %v1060, %v1091
    %v1093 = vsel %vm619, %v1068, %v1064
    %v1094 = vsel %vm621, %v1072, %v1093
    %v1095 = vsel %vm623, %v1076, %v1094
    %v1096 = vsel %vm625, %v1080, %v1095
    %v1097 = vsel %vm627, %v1084, %v1096
    %v1098 = vsel %vm629, %v1088, %v1097
    %v1099 = vsel %vm631, %v1092, %v1098
    %v1100 = vsel %vm642, %v1099, 0
    %1102 = vmatprep.subr.mxu0 0.0
    %1103 = vmatpush1.msra.mxu0 %v80
    %1104 = vmatprep.subr.mxu0 0.0
    %1105 = vmatpush1.msra.mxu0 0.0
    %1106 = vmatprep.subr.mxu0 0.0
    %1107 = vmatpush1.msra.mxu0 0.0
    %1108 = vmatprep.subr.mxu0 0.0
    %1109 = vmatpush1.msra.mxu0 0.0
    %1110 = vmatprep.subr.mxu0 0.0
    %1111 = vmatpush1.msra.mxu0 0.0
    %1112 = vmatprep.subr.mxu0 0.0
    %1113 = vmatpush1.msra.mxu0 0.0
    %1114 = vmatprep.subr.mxu0 0.0
    %1115 = vmatpush1.msra.mxu0 0.0
    %1116 = vmatprep.subr.mxu0 0.0
    %1117 = vmatpush1.msra.mxu0 0.0
    %1118 = vmatprep.subr.mxu0 0.0
    %1119 = vmatpush1.msra.mxu0 0.0
    %1120 = vmatprep.subr.mxu0 0.0
    %1121 = vmatpush1.msra.mxu0 0.0
    %1122 = vmatprep.subr.mxu0 0.0
    %1123 = vmatpush1.msra.mxu0 0.0
    %1124 = vmatprep.subr.mxu0 0.0
    %1125 = vmatpush1.msra.mxu0 0.0
    %1126 = vmatprep.subr.mxu0 0.0
    %1127 = vmatpush1.msra.mxu0 0.0
    %1128 = vmatprep.subr.mxu0 0.0
    %1129 = vmatpush1.msra.mxu0 0.0
    %1130 = vmatprep.subr.mxu0 0.0
    %1131 = vmatpush1.msra.mxu0 0.0
    %1132 = vmatprep.subr.mxu0 0.0
    %1133 = vmatpush1.msra.mxu0 0.0
    %1134 = vmatprep.subr.mxu0 0.0
    %1135 = vmatpush1.msra.mxu0 0.0
    %1136 = vmatprep.subr.mxu0 0.0
    %1137 = vmatpush1.msra.mxu0 0.0
    %1138 = vmatprep.subr.mxu0 0.0
    %1139 = vmatpush1.msra.mxu0 0.0
    %1140 = vmatprep.subr.mxu0 0.0
    %1141 = vmatpush1.msra.mxu0 0.0
    %1142 = vmatprep.subr.mxu0 0.0
    %1143 = vmatpush1.msra.mxu0 0.0
    %1144 = vmatprep.subr.mxu0 0.0
    %1145 = vmatpush1.msra.mxu0 0.0
    %1146 = vmatprep.subr.mxu0 0.0
    %1147 = vmatpush1.msra.mxu0 0.0
    %1148 = vmatprep.subr.mxu0 0.0
    %1149 = vmatpush1.msra.mxu0 0.0
    %1150 = vmatprep.subr.mxu0 0.0
    %1151 = vmatpush1.msra.mxu0 0.0
    %1152 = vmatprep.subr.mxu0 0.0
    %1153 = vmatpush1.msra.mxu0 0.0
    %1154 = vmatprep.subr.mxu0 0.0
    %1155 = vmatpush1.msra.mxu0 0.0
    %1156 = vmatprep.subr.mxu0 0.0
    %1157 = vmatpush1.msra.mxu0 0.0
    %1158 = vmatprep.subr.mxu0 0.0
    %1159 = vmatpush1.msra.mxu0 0.0
    %1160 = vmatprep.subr.mxu0 0.0
    %1161 = vmatpush1.msra.mxu0 0.0
    %1162 = vmatprep.subr.mxu0 0.0
    %1163 = vmatpush1.msra.mxu0 0.0
    %1164 = vmatprep.subr.mxu0 0.0
    %1165 = vmatpush1.msra.mxu0 0.0
    %1166 = vmatprep.mubr.f32.mxu0 0.0
    %1167 = vmatmul.mubr.f32.gmra.mrb[0].mxu0 %v1100
    %v1168 = vpop.f32.mrb[0].mxu0
    %v1169 = vadd.f32 0.0, %v1168
    %v1170 = vpop.f32.mrb[0].mxu0
    %1171 = vdwg.mxu0
    %1180 = vset.pattern.permute.xlu0 0
    %1181 = vperm.xlu0 %1180, %v1021
    %v1182 = vpop.permute.xlu0 %1181
    %1183 = vset.pattern.permute.xlu0 0
    %1184 = vperm.xlu0 %1183, %v1022
    %v1185 = vpop.permute.xlu0 %1184
    %1186 = vset.pattern.permute.xlu0 0
    %1187 = vperm.xlu0 %1186, %v1023
    %v1188 = vpop.permute.xlu0 %1187
    %1189 = vset.pattern.permute.xlu0 0
    %1190 = vperm.xlu0 %1189, %v1024
    %v1191 = vpop.permute.xlu0 %1190
    %1192 = vset.pattern.permute.xlu0 0
    %1193 = vperm.xlu0 %1192, %v1025
    %v1194 = vpop.permute.xlu0 %1193
    %1195 = vset.pattern.permute.xlu0 0
    %1196 = vperm.xlu0 %1195, %v1026
    %v1197 = vpop.permute.xlu0 %1196
    %1198 = vset.pattern.permute.xlu0 0
    %1199 = vperm.xlu0 %1198, %v1027
    %v1200 = vpop.permute.xlu0 %1199
    %1201 = vset.pattern.permute.xlu0 0
    %1202 = vperm.xlu0 %1201, %v1028
    %v1203 = vpop.permute.xlu0 %1202
    %v1204 = vlaneseq
    %v1205 = vshrl.u32 %v1204, 7
    %v1206 = vsub.s32 %v554, %v1205
    %v1207 = vrot.slane %v1182, %v1206
    %v1208 = vlaneseq
    %v1209 = vshrl.u32 %v1208, 7
    %v1210 = vsub.s32 %v554, %v1209
    %v1211 = vrot.slane %v1185, %v1210
    %v1212 = vlaneseq
    %v1213 = vshrl.u32 %v1212, 7
    %v1214 = vsub.s32 %v554, %v1213
    %v1215 = vrot.slane %v1188, %v1214
    %v1216 = vlaneseq
    %v1217 = vshrl.u32 %v1216, 7
    %v1218 = vsub.s32 %v554, %v1217
    %v1219 = vrot.slane %v1191, %v1218
    %v1220 = vlaneseq
    %v1221 = vshrl.u32 %v1220, 7
    %v1222 = vsub.s32 %v554, %v1221
    %v1223 = vrot.slane %v1194, %v1222
    %v1224 = vlaneseq
    %v1225 = vshrl.u32 %v1224, 7
    %v1226 = vsub.s32 %v554, %v1225
    %v1227 = vrot.slane %v1197, %v1226
    %v1228 = vlaneseq
    %v1229 = vshrl.u32 %v1228, 7
    %v1230 = vsub.s32 %v554, %v1229
    %v1231 = vrot.slane %v1200, %v1230
    %v1232 = vlaneseq
    %v1233 = vshrl.u32 %v1232, 7
    %v1234 = vsub.s32 %v554, %v1233
    %v1235 = vrot.slane %v1203, %v1234
    %v1236 = vsel %vm619, %v1211, %v1207
    %v1237 = vsel %vm621, %v1215, %v1236
    %v1238 = vsel %vm623, %v1219, %v1237
    %v1239 = vsel %vm625, %v1223, %v1238
    %v1240 = vsel %vm627, %v1227, %v1239
    %v1241 = vsel %vm629, %v1231, %v1240
    %v1242 = vsel %vm631, %v1235, %v1241
    %v1243 = vsel %vm642, %v1242, 0
    %1245 = vmatprep.subr.mxu0 0.0
    %1246 = vmatpush1.msra.mxu0 %v81
    %1247 = vmatprep.subr.mxu0 0.0
    %1248 = vmatpush1.msra.mxu0 0.0
    %1249 = vmatprep.subr.mxu0 0.0
    %1250 = vmatpush1.msra.mxu0 0.0
    %1251 = vmatprep.subr.mxu0 0.0
    %1252 = vmatpush1.msra.mxu0 0.0
    %1253 = vmatprep.subr.mxu0 0.0
    %1254 = vmatpush1.msra.mxu0 0.0
    %1255 = vmatprep.subr.mxu0 0.0
    %1256 = vmatpush1.msra.mxu0 0.0
    %1257 = vmatprep.subr.mxu0 0.0
    %1258 = vmatpush1.msra.mxu0 0.0
    %1259 = vmatprep.subr.mxu0 0.0
    %1260 = vmatpush1.msra.mxu0 0.0
    %1261 = vmatprep.subr.mxu0 0.0
    %1262 = vmatpush1.msra.mxu0 0.0
    %1263 = vmatprep.subr.mxu0 0.0
    %1264 = vmatpush1.msra.mxu0 0.0
    %1265 = vmatprep.subr.mxu0 0.0
    %1266 = vmatpush1.msra.mxu0 0.0
    %1267 = vmatprep.subr.mxu0 0.0
    %1268 = vmatpush1.msra.mxu0 0.0
    %1269 = vmatprep.subr.mxu0 0.0
    %1270 = vmatpush1.msra.mxu0 0.0
    %1271 = vmatprep.subr.mxu0 0.0
    %1272 = vmatpush1.msra.mxu0 0.0
    %1273 = vmatprep.subr.mxu0 0.0
    %1274 = vmatpush1.msra.mxu0 0.0
    %1275 = vmatprep.subr.mxu0 0.0
    %1276 = vmatpush1.msra.mxu0 0.0
    %1277 = vmatprep.subr.mxu0 0.0
    %1278 = vmatpush1.msra.mxu0 0.0
    %1279 = vmatprep.subr.mxu0 0.0
    %1280 = vmatpush1.msra.mxu0 0.0
    %1281 = vmatprep.subr.mxu0 0.0
    %1282 = vmatpush1.msra.mxu0 0.0
    %1283 = vmatprep.subr.mxu0 0.0
    %1284 = vmatpush1.msra.mxu0 0.0
    %1285 = vmatprep.subr.mxu0 0.0
    %1286 = vmatpush1.msra.mxu0 0.0
    %1287 = vmatprep.subr.mxu0 0.0
    %1288 = vmatpush1.msra.mxu0 0.0
    %1289 = vmatprep.subr.mxu0 0.0
    %1290 = vmatpush1.msra.mxu0 0.0
    %1291 = vmatprep.subr.mxu0 0.0
    %1292 = vmatpush1.msra.mxu0 0.0
    %1293 = vmatprep.subr.mxu0 0.0
    %1294 = vmatpush1.msra.mxu0 0.0
    %1295 = vmatprep.subr.mxu0 0.0
    %1296 = vmatpush1.msra.mxu0 0.0
    %1297 = vmatprep.subr.mxu0 0.0
    %1298 = vmatpush1.msra.mxu0 0.0
    %1299 = vmatprep.subr.mxu0 0.0
    %1300 = vmatpush1.msra.mxu0 0.0
    %1301 = vmatprep.subr.mxu0 0.0
    %1302 = vmatpush1.msra.mxu0 0.0
    %1303 = vmatprep.subr.mxu0 0.0
    %1304 = vmatpush1.msra.mxu0 0.0
    %1305 = vmatprep.subr.mxu0 0.0
    %1306 = vmatpush1.msra.mxu0 0.0
    %1307 = vmatprep.subr.mxu0 0.0
    %1308 = vmatpush1.msra.mxu0 0.0
    %1309 = vmatprep.mubr.f32.mxu0 0.0
    %1310 = vmatmul.mubr.f32.gmra.mrb[0].mxu0 %v1243
    %v1311 = vpop.f32.mrb[0].mxu0
    %v1312 = vadd.f32 0.0, %v1311
    %v1313 = vpop.f32.mrb[0].mxu0
    %1314 = vdwg.mxu0
    %1315 = vst.msk [vmem:[#allocation9] sm:$0xff] %vm93, %v1169
    %1316 = vst.msk [vmem:[#allocation9 + $0x8] sm:$0xff] %vm93, %v1312
    %v1317 = vld [vmem:[%s5] sm:$0xff]
    %v1318 = vld [vmem:[%s5 + $0x8] sm:$0xff]
    %v1319 = vld [vmem:[%s5 + $0x10] sm:$0xff]
    %v1320 = vld [vmem:[%s5 + $0x18] sm:$0xff]
    %v1322 = vsel %vm93, %v1169, 0
    %v1325 = vsel %vm93, %v1312, 0
    %1327 = vmatprep.subr.mxu0 0.0
    %1328 = vmatpush1.msra.mxu0 %v1317
    %1329 = vmatprep.subr.mxu0 0.0
    %1330 = vmatpush1.msra.mxu0 %v1318
    %1331 = vmatprep.subr.mxu0 0.0
    %1332 = vmatpush1.msra.mxu0 %v1319
    %1333 = vmatprep.subr.mxu0 0.0
    %1334 = vmatpush1.msra.mxu0 %v1320
    %1335 = vmatprep.subr.mxu0 0.0
    %1336 = vmatpush1.msra.mxu0 0.0
    %1337 = vmatprep.subr.mxu0 0.0
    %1338 = vmatpush1.msra.mxu0 0.0
    %1339 = vmatprep.subr.mxu0 0.0
    %1340 = vmatpush1.msra.mxu0 0.0
    %1341 = vmatprep.subr.mxu0 0.0
    %1342 = vmatpush1.msra.mxu0 0.0
    %1343 = vmatprep.subr.mxu0 0.0
    %1344 = vmatpush1.msra.mxu0 0.0
    %1345 = vmatprep.subr.mxu0 0.0
    %1346 = vmatpush1.msra.mxu0 0.0
    %1347 = vmatprep.subr.mxu0 0.0
    %1348 = vmatpush1.msra.mxu0 0.0
    %1349 = vmatprep.subr.mxu0 0.0
    %1350 = vmatpush1.msra.mxu0 0.0
    %1351 = vmatprep.subr.mxu0 0.0
    %1352 = vmatpush1.msra.mxu0 0.0
    %1353 = vmatprep.subr.mxu0 0.0
    %1354 = vmatpush1.msra.mxu0 0.0
    %1355 = vmatprep.subr.mxu0 0.0
    %1356 = vmatpush1.msra.mxu0 0.0
    %1357 = vmatprep.subr.mxu0 0.0
    %1358 = vmatpush1.msra.mxu0 0.0
    %1359 = vmatprep.subr.mxu0 0.0
    %1360 = vmatpush1.msra.mxu0 0.0
    %1361 = vmatprep.subr.mxu0 0.0
    %1362 = vmatpush1.msra.mxu0 0.0
    %1363 = vmatprep.subr.mxu0 0.0
    %1364 = vmatpush1.msra.mxu0 0.0
    %1365 = vmatprep.subr.mxu0 0.0
    %1366 = vmatpush1.msra.mxu0 0.0
    %1367 = vmatprep.subr.mxu0 0.0
    %1368 = vmatpush1.msra.mxu0 0.0
    %1369 = vmatprep.subr.mxu0 0.0
    %1370 = vmatpush1.msra.mxu0 0.0
    %1371 = vmatprep.subr.mxu0 0.0
    %1372 = vmatpush1.msra.mxu0 0.0
    %1373 = vmatprep.subr.mxu0 0.0
    %1374 = vmatpush1.msra.mxu0 0.0
    %1375 = vmatprep.subr.mxu0 0.0
    %1376 = vmatpush1.msra.mxu0 0.0
    %1377 = vmatprep.subr.mxu0 0.0
    %1378 = vmatpush1.msra.mxu0 0.0
    %1379 = vmatprep.subr.mxu0 0.0
    %1380 = vmatpush1.msra.mxu0 0.0
    %1381 = vmatprep.subr.mxu0 0.0
    %1382 = vmatpush1.msra.mxu0 0.0
    %1383 = vmatprep.subr.mxu0 0.0
    %1384 = vmatpush1.msra.mxu0 0.0
    %1385 = vmatprep.subr.mxu0 0.0
    %1386 = vmatpush1.msra.mxu0 0.0
    %1387 = vmatprep.subr.mxu0 0.0
    %1388 = vmatpush1.msra.mxu0 0.0
    %1389 = vmatprep.subr.mxu0 0.0
    %1390 = vmatpush1.msra.mxu0 0.0
    %1391 = vmatprep.mubr.f32.mxu0 0.0
    %1392 = vmatmul.mubr.f32.gmra.mrb[0].mxu0 %v1322
    %v1393 = vpop.f32.mrb[0].mxu0
    %v1394 = vadd.f32 0.0, %v1393
    %v1395 = vpop.f32.mrb[0].mxu0
    %1396 = vmatprep.mubr.f32.mxu0 0.0
    %1397 = vmatmul.mubr.f32.gmra.mrb[0].mxu0 %v1325
    %v1398 = vpop.f32.mrb[0].mxu0
    %v1399 = vadd.f32 0.0, %v1398
    %v1400 = vpop.f32.mrb[0].mxu0
    %1401 = vdwg.mxu0
    %v1402 = vld [vmem:[%s7] sm:$0x1]
    %v1403 = vld [vmem:[#allocation7] sm:$0xff]
    %v1404 = vld [vmem:[#allocation7 + $0x8] sm:$0xff]
    %v1405 = vld [vmem:[#allocation7 + $0x10] sm:$0xff]
    %v1406 = vld [vmem:[#allocation7 + $0x18] sm:$0xff]
    %v1408 = vsel %vm93, 0.0, 0
    %1410 = vmatprep.subr.mxu0 0.0
    %1411 = vmatpush1.msra.mxu0 %v1403
    %1412 = vmatprep.subr.mxu0 0.0
    %1413 = vmatpush1.msra.mxu0 %v1404
    %1414 = vmatprep.subr.mxu0 0.0
    %1415 = vmatpush1.msra.mxu0 %v1405
    %1416 = vmatprep.subr.mxu0 0.0
    %1417 = vmatpush1.msra.mxu0 %v1406
    %1418 = vmatprep.subr.mxu0 0.0
    %1419 = vmatpush1.msra.mxu0 0.0
    %1420 = vmatprep.subr.mxu0 0.0
    %1421 = vmatpush1.msra.mxu0 0.0
    %1422 = vmatprep.subr.mxu0 0.0
    %1423 = vmatpush1.msra.mxu0 0.0
    %1424 = vmatprep.subr.mxu0 0.0
    %1425 = vmatpush1.msra.mxu0 0.0
    %1426 = vmatprep.subr.mxu0 0.0
    %1427 = vmatpush1.msra.mxu0 0.0
    %1428 = vmatprep.subr.mxu0 0.0
    %1429 = vmatpush1.msra.mxu0 0.0
    %1430 = vmatprep.subr.mxu0 0.0
    %1431 = vmatpush1.msra.mxu0 0.0
    %1432 = vmatprep.subr.mxu0 0.0
    %1433 = vmatpush1.msra.mxu0 0.0
    %1434 = vmatprep.subr.mxu0 0.0
    %1435 = vmatpush1.msra.mxu0 0.0
    %1436 = vmatprep.subr.mxu0 0.0
    %1437 = vmatpush1.msra.mxu0 0.0
    %1438 = vmatprep.subr.mxu0 0.0
    %1439 = vmatpush1.msra.mxu0 0.0
    %1440 = vmatprep.subr.mxu0 0.0
    %1441 = vmatpush1.msra.mxu0 0.0
    %1442 = vmatprep.subr.mxu0 0.0
    %1443 = vmatpush1.msra.mxu0 0.0
    %1444 = vmatprep.subr.mxu0 0.0
    %1445 = vmatpush1.msra.mxu0 0.0
    %1446 = vmatprep.subr.mxu0 0.0
    %1447 = vmatpush1.msra.mxu0 0.0
    %1448 = vmatprep.subr.mxu0 0.0
    %1449 = vmatpush1.msra.mxu0 0.0
    %1450 = vmatprep.subr.mxu0 0.0
    %1451 = vmatpush1.msra.mxu0 0.0
    %1452 = vmatprep.subr.mxu0 0.0
    %1453 = vmatpush1.msra.mxu0 0.0
    %1454 = vmatprep.subr.mxu0 0.0
    %1455 = vmatpush1.msra.mxu0 0.0
    %1456 = vmatprep.subr.mxu0 0.0
    %1457 = vmatpush1.msra.mxu0 0.0
    %1458 = vmatprep.subr.mxu0 0.0
    %1459 = vmatpush1.msra.mxu0 0.0
    %1460 = vmatprep.subr.mxu0 0.0
    %1461 = vmatpush1.msra.mxu0 0.0
    %1462 = vmatprep.subr.mxu0 0.0
    %1463 = vmatpush1.msra.mxu0 0.0
    %1464 = vmatprep.subr.mxu0 0.0
    %1465 = vmatpush1.msra.mxu0 0.0
    %1466 = vmatprep.subr.mxu0 0.0
    %1467 = vmatpush1.msra.mxu0 0.0
    %1468 = vmatprep.subr.mxu0 0.0
    %1469 = vmatpush1.msra.mxu0 0.0
    %1470 = vmatprep.subr.mxu0 0.0
    %1471 = vmatpush1.msra.mxu0 0.0
    %1472 = vmatprep.subr.mxu0 0.0
    %1473 = vmatpush1.msra.mxu0 0.0
    %1474 = vmatprep.mubr.f32.mxu0 0.0
    %1475 = vmatmul.mubr.f32.gmra.mrb[0].mxu0 %v1408
    %v1476 = vpop.f32.mrb[0].mxu0
    %v1477 = vadd.f32 0.0, %v1476
    %v1478 = vpop.f32.mrb[0].mxu0
    %1479 = vdwg.mxu0
    %v1481 = vrot.slane %v1477, 1
    %v1484 = vadd.f32 %v1394, %v1477
    %v1485 = vadd.f32 %v1399, %v1481
    %v1487 = vlaneseq
    %v1488 = vshrl.u32 %v1487, 7
    %v1489 = vsub.s32 0, %v1488
    %v1490 = vrot.slane %v1402, %v1489
    %v1492 = vadd.f32 %v1484, %v1490
    %v1493 = vadd.f32 %v1485, %v1490
    %v1494 = vxor.u32 %v1492, 2147483648
    %v1495 = vxor.u32 %v1493, 2147483648
    %v1496 = vmul.f32 %v1494, 1.442695
    %v1497 = vpow.pop %v1496
    %v1498 = vmul.f32 %v1495, 1.442695
    %v1499 = vpow.pop %v1498
    %v1500 = vadd.f32 %v1497, 1.0
    %v1501 = vadd.f32 %v1499, 1.0
    %v1502 = vrcp.pop %v1500
    %v1503 = vmul.f32 1.0, %v1502
    %v1504 = vrcp.pop %v1501
    %v1505 = vmul.f32 1.0, %v1504
    %v1506 = vadd.f32 %v1477, %v1490
    %v1508 = vrot.slane %v1506, 1
    %1509 = vrot.lane.b32.xlu0 %v1506, 96
    %v1510 = vpop.permute.xlu0 %1509
    %1511 = vrot.lane.b32.xlu0 %v1508, 96
    %v1512 = vpop.permute.xlu0 %1511
    %v1515 = vmul.f32 %v1503, %v1510
    %v1516 = vmul.f32 %v1505, %v1512
    %1519 = vrot.lane.b32.xlu0 %v1515, 32
    %v1520 = vpop.permute.xlu0 %1519
    %1521 = vrot.lane.b32.xlu0 %v1516, 32
    %v1522 = vpop.permute.xlu0 %1521
    %v1525 = vadd.f32 %v1394, %v1520
    %v1526 = vadd.f32 %v1399, %v1522
    %v1527 = vtanh.pop %v1525
    %v1528 = vtanh.pop %v1526
    %v1529 = vsub.f32 1.0, %v1503
    %v1530 = vsub.f32 1.0, %v1505
    %1533 = vrot.lane.b32.xlu0 %v1527, 64
    %v1534 = vpop.permute.xlu0 %1533
    %1535 = vrot.lane.b32.xlu0 %v1528, 64
    %v1536 = vpop.permute.xlu0 %1535
    %v1539 = vmul.f32 %v1529, %v1534
    %v1540 = vmul.f32 %v1530, %v1536
    %v1541 = vmul.f32 %v1503, 0.0
    %v1542 = vmul.f32 %v1505, 0.0
    %v1543 = vadd.f32 %v1539, %v1541
    %v1544 = vadd.f32 %v1540, %v1542
    %v1547 = vrot.slane %v1544, 7
    %v1548 = vsel %vm619, %v1547, %v1543
    %v1549 = vsel %vm93, %v1548, 0
    %1551 = vmatprep.subr.mxu0 0.0
    %1552 = vmatpush1.msra.mxu0 %v1403
    %1553 = vmatprep.subr.mxu0 0.0
    %1554 = vmatpush1.msra.mxu0 %v1404
    %1555 = vmatprep.subr.mxu0 0.0
    %1556 = vmatpush1.msra.mxu0 %v1405
    %1557 = vmatprep.subr.mxu0 0.0
    %1558 = vmatpush1.msra.mxu0 %v1406
    %1559 = vmatprep.subr.mxu0 0.0
    %1560 = vmatpush1.msra.mxu0 0.0
    %1561 = vmatprep.subr.mxu0 0.0
    %1562 = vmatpush1.msra.mxu0 0.0
    %1563 = vmatprep.subr.mxu0 0.0
    %1564 = vmatpush1.msra.mxu0 0.0
    %1565 = vmatprep.subr.mxu0 0.0
    %1566 = vmatpush1.msra.mxu0 0.0
    %1567 = vmatprep.subr.mxu0 0.0
    %1568 = vmatpush1.msra.mxu0 0.0
    %1569 = vmatprep.subr.mxu0 0.0
    %1570 = vmatpush1.msra.mxu0 0.0
    %1571 = vmatprep.subr.mxu0 0.0
    %1572 = vmatpush1.msra.mxu0 0.0
    %1573 = vmatprep.subr.mxu0 0.0
    %1574 = vmatpush1.msra.mxu0 0.0
    %1575 = vmatprep.subr.mxu0 0.0
    %1576 = vmatpush1.msra.mxu0 0.0
    %1577 = vmatprep.subr.mxu0 0.0
    %1578 = vmatpush1.msra.mxu0 0.0
    %1579 = vmatprep.subr.mxu0 0.0
    %1580 = vmatpush1.msra.mxu0 0.0
    %1581 = vmatprep.subr.mxu0 0.0
    %1582 = vmatpush1.msra.mxu0 0.0
    %1583 = vmatprep.subr.mxu0 0.0
    %1584 = vmatpush1.msra.mxu0 0.0
    %1585 = vmatprep.subr.mxu0 0.0
    %1586 = vmatpush1.msra.mxu0 0.0
    %1587 = vmatprep.subr.mxu0 0.0
    %1588 = vmatpush1.msra.mxu0 0.0
    %1589 = vmatprep.subr.mxu0 0.0
    %1590 = vmatpush1.msra.mxu0 0.0
    %1591 = vmatprep.subr.mxu0 0.0
    %1592 = vmatpush1.msra.mxu0 0.0
    %1593 = vmatprep.subr.mxu0 0.0
    %1594 = vmatpush1.msra.mxu0 0.0
    %1595 = vmatprep.subr.mxu0 0.0
    %1596 = vmatpush1.msra.mxu0 0.0
    %1597 = vmatprep.subr.mxu0 0.0
    %1598 = vmatpush1.msra.mxu0 0.0
    %1599 = vmatprep.subr.mxu0 0.0
    %1600 = vmatpush1.msra.mxu0 0.0
    %1601 = vmatprep.subr.mxu0 0.0
    %1602 = vmatpush1.msra.mxu0 0.0
    %1603 = vmatprep.subr.mxu0 0.0
    %1604 = vmatpush1.msra.mxu0 0.0
    %1605 = vmatprep.subr.mxu0 0.0
    %1606 = vmatpush1.msra.mxu0 0.0
    %1607 = vmatprep.subr.mxu0 0.0
    %1608 = vmatpush1.msra.mxu0 0.0
    %1609 = vmatprep.subr.mxu0 0.0
    %1610 = vmatpush1.msra.mxu0 0.0
    %1611 = vmatprep.subr.mxu0 0.0
    %1612 = vmatpush1.msra.mxu0 0.0
    %1613 = vmatprep.subr.mxu0 0.0
    %1614 = vmatpush1.msra.mxu0 0.0
    %1615 = vmatprep.mubr.f32.mxu0 0.0
    %1616 = vmatmul.mubr.f32.gmra.mrb[0].mxu0 %v1549
    %v1617 = vpop.f32.mrb[0].mxu0
    %v1618 = vadd.f32 0.0, %v1617
    %v1619 = vpop.f32.mrb[0].mxu0
    %1620 = vdwg.mxu0
    %v1622 = vrot.slane %v1618, 7
    %v1625 = vadd.f32 %v1394, %v1622
    %v1626 = vadd.f32 %v1399, %v1618
    %v1627 = vadd.f32 %v1625, %v1490
    %v1628 = vadd.f32 %v1626, %v1490
    %v1629 = vxor.u32 %v1627, 2147483648
    %v1630 = vxor.u32 %v1628, 2147483648
    %v1631 = vmul.f32 %v1629, 1.442695
    %v1632 = vpow.pop %v1631
    %v1633 = vmul.f32 %v1630, 1.442695
    %v1634 = vpow.pop %v1633
    %v1635 = vadd.f32 %v1632, 1.0
    %v1636 = vadd.f32 %v1634, 1.0
    %v1637 = vrcp.pop %v1635
    %v1638 = vmul.f32 1.0, %v1637
    %v1639 = vrcp.pop %v1636
    %v1640 = vmul.f32 1.0, %v1639
    %v1641 = vadd.f32 %v1618, %v1490
    %v1643 = vrot.slane %v1641, 7
    %1644 = vrot.lane.b32.xlu0 %v1643, 96
    %v1645 = vpop.permute.xlu0 %1644
    %1646 = vrot.lane.b32.xlu0 %v1641, 96
    %v1647 = vpop.permute.xlu0 %1646
    %v1650 = vmul.f32 %v1638, %v1645
    %v1651 = vmul.f32 %v1640, %v1647
    %1654 = vrot.lane.b32.xlu0 %v1650, 32
    %v1655 = vpop.permute.xlu0 %1654
    %1656 = vrot.lane.b32.xlu0 %v1651, 32
    %v1657 = vpop.permute.xlu0 %1656
    %v1660 = vadd.f32 %v1394, %v1655
    %v1661 = vadd.f32 %v1399, %v1657
    %v1662 = vtanh.pop %v1660
    %v1663 = vtanh.pop %v1661
    %v1664 = vsub.f32 1.0, %v1638
    %v1665 = vsub.f32 1.0, %v1640
    %1668 = vrot.lane.b32.xlu0 %v1662, 64
    %v1669 = vpop.permute.xlu0 %1668
    %1670 = vrot.lane.b32.xlu0 %v1663, 64
    %v1671 = vpop.permute.xlu0 %1670
    %v1674 = vmul.f32 %v1664, %v1669
    %v1675 = vmul.f32 %v1665, %v1671
    %v1676 = vrot.slane %v1543, 7
    %v1679 = vmul.f32 %v1638, %v1676
    %v1680 = vmul.f32 %v1640, %v1547
    %v1681 = vadd.f32 %v1674, %v1679
    %v1682 = vadd.f32 %v1675, %v1680
    %v1685 = vrot.slane %v1681, 1
    %v1686 = vsel %vm619, %v1682, %v1685
    %v1687 = vsel %vm93, %v1686, 0
    %1689 = vmatprep.subr.mxu0 0.0
    %1690 = vmatpush1.msra.mxu0 %v1403
    %1691 = vmatprep.subr.mxu0 0.0
    %1692 = vmatpush1.msra.mxu0 %v1404
    %1693 = vmatprep.subr.mxu0 0.0
    %1694 = vmatpush1.msra.mxu0 %v1405
    %1695 = vmatprep.subr.mxu0 0.0
    %1696 = vmatpush1.msra.mxu0 %v1406
    %1697 = vmatprep.subr.mxu0 0.0
    %1698 = vmatpush1.msra.mxu0 0.0
    %1699 = vmatprep.subr.mxu0 0.0
    %1700 = vmatpush1.msra.mxu0 0.0
    %1701 = vmatprep.subr.mxu0 0.0
    %1702 = vmatpush1.msra.mxu0 0.0
    %1703 = vmatprep.subr.mxu0 0.0
    %1704 = vmatpush1.msra.mxu0 0.0
    %1705 = vmatprep.subr.mxu0 0.0
    %1706 = vmatpush1.msra.mxu0 0.0
    %1707 = vmatprep.subr.mxu0 0.0
    %1708 = vmatpush1.msra.mxu0 0.0
    %1709 = vmatprep.subr.mxu0 0.0
    %1710 = vmatpush1.msra.mxu0 0.0
    %1711 = vmatprep.subr.mxu0 0.0
    %1712 = vmatpush1.msra.mxu0 0.0
    %1713 = vmatprep.subr.mxu0 0.0
    %1714 = vmatpush1.msra.mxu0 0.0
    %1715 = vmatprep.subr.mxu0 0.0
    %1716 = vmatpush1.msra.mxu0 0.0
    %1717 = vmatprep.subr.mxu0 0.0
    %1718 = vmatpush1.msra.mxu0 0.0
    %1719 = vmatprep.subr.mxu0 0.0
    %1720 = vmatpush1.msra.mxu0 0.0
    %1721 = vmatprep.subr.mxu0 0.0
    %1722 = vmatpush1.msra.mxu0 0.0
    %1723 = vmatprep.subr.mxu0 0.0
    %1724 = vmatpush1.msra.mxu0 0.0
    %1725 = vmatprep.subr.mxu0 0.0
    %1726 = vmatpush1.msra.mxu0 0.0
    %1727 = vmatprep.subr.mxu0 0.0
    %1728 = vmatpush1.msra.mxu0 0.0
    %1729 = vmatprep.subr.mxu0 0.0
    %1730 = vmatpush1.msra.mxu0 0.0
    %1731 = vmatprep.subr.mxu0 0.0
    %1732 = vmatpush1.msra.mxu0 0.0
    %1733 = vmatprep.subr.mxu0 0.0
    %1734 = vmatpush1.msra.mxu0 0.0
    %1735 = vmatprep.subr.mxu0 0.0
    %1736 = vmatpush1.msra.mxu0 0.0
    %1737 = vmatprep.subr.mxu0 0.0
    %1738 = vmatpush1.msra.mxu0 0.0
    %1739 = vmatprep.subr.mxu0 0.0
    %1740 = vmatpush1.msra.mxu0 0.0
    %1741 = vmatprep.subr.mxu0 0.0
    %1742 = vmatpush1.msra.mxu0 0.0
    %1743 = vmatprep.subr.mxu0 0.0
    %1744 = vmatpush1.msra.mxu0 0.0
    %1745 = vmatprep.subr.mxu0 0.0
    %1746 = vmatpush1.msra.mxu0 0.0
    %1747 = vmatprep.subr.mxu0 0.0
    %1748 = vmatpush1.msra.mxu0 0.0
    %1749 = vmatprep.subr.mxu0 0.0
    %1750 = vmatpush1.msra.mxu0 0.0
    %1751 = vmatprep.subr.mxu0 0.0
    %1752 = vmatpush1.msra.mxu0 0.0
    %1753 = vmatprep.mubr.f32.mxu0 0.0
    %1754 = vmatmul.mubr.f32.gmra.mrb[0].mxu0 %v1687
    %v1755 = vpop.f32.mrb[0].mxu0
    %v1756 = vadd.f32 0.0, %v1755
    %v1757 = vpop.f32.mrb[0].mxu0
    %1758 = vdwg.mxu0
    %v1760 = vrot.slane %v1756, 6
    %v1761 = vrot.slane %v1756, 7
    %v1764 = vadd.f32 %v1394, %v1760
    %v1765 = vadd.f32 %v1399, %v1761
    %v1766 = vadd.f32 %v1764, %v1490
    %v1767 = vadd.f32 %v1765, %v1490
    %v1768 = vxor.u32 %v1766, 2147483648
    %v1769 = vxor.u32 %v1767, 2147483648
    %v1770 = vmul.f32 %v1768, 1.442695
    %v1771 = vpow.pop %v1770
    %v1772 = vmul.f32 %v1769, 1.442695
    %v1773 = vpow.pop %v1772
    %v1774 = vadd.f32 %v1771, 1.0
    %v1775 = vadd.f32 %v1773, 1.0
    %v1776 = vrcp.pop %v1774
    %v1777 = vmul.f32 1.0, %v1776
    %v1778 = vrcp.pop %v1775
    %v1779 = vmul.f32 1.0, %v1778
    %v1780 = vadd.f32 %v1756, %v1490
    %v1782 = vrot.slane %v1780, 6
    %v1783 = vrot.slane %v1780, 7
    %1784 = vrot.lane.b32.xlu0 %v1782, 96
    %v1785 = vpop.permute.xlu0 %1784
    %1786 = vrot.lane.b32.xlu0 %v1783, 96
    %v1787 = vpop.permute.xlu0 %1786
    %v1790 = vmul.f32 %v1777, %v1785
    %v1791 = vmul.f32 %v1779, %v1787
    %1794 = vrot.lane.b32.xlu0 %v1790, 32
    %v1795 = vpop.permute.xlu0 %1794
    %1796 = vrot.lane.b32.xlu0 %v1791, 32
    %v1797 = vpop.permute.xlu0 %1796
    %v1800 = vadd.f32 %v1394, %v1795
    %v1801 = vadd.f32 %v1399, %v1797
    %v1802 = vtanh.pop %v1800
    %v1803 = vtanh.pop %v1801
    %v1804 = vsub.f32 1.0, %v1777
    %v1805 = vsub.f32 1.0, %v1779
    %1808 = vrot.lane.b32.xlu0 %v1802, 64
    %v1809 = vpop.permute.xlu0 %1808
    %1810 = vrot.lane.b32.xlu0 %v1803, 64
    %v1811 = vpop.permute.xlu0 %1810
    %v1814 = vmul.f32 %v1804, %v1809
    %v1815 = vmul.f32 %v1805, %v1811
    %v1816 = vrot.slane %v1681, 7
    %v1817 = vrot.slane %v1682, 7
    %v1820 = vmul.f32 %v1777, %v1816
    %v1821 = vmul.f32 %v1779, %v1817
    %v1822 = vadd.f32 %v1814, %v1820
    %v1823 = vadd.f32 %v1815, %v1821
    %v1826 = vrot.slane %v1822, 2
    %v1827 = vrot.slane %v1823, 1
    %v1828 = vsel %vm619, %v1827, %v1826
    %v1829 = vsel %vm93, %v1828, 0
    %1831 = vmatprep.subr.mxu0 0.0
    %1832 = vmatpush1.msra.mxu0 %v1403
    %1833 = vmatprep.subr.mxu0 0.0
    %1834 = vmatpush1.msra.mxu0 %v1404
    %1835 = vmatprep.subr.mxu0 0.0
    %1836 = vmatpush1.msra.mxu0 %v1405
    %1837 = vmatprep.subr.mxu0 0.0
    %1838 = vmatpush1.msra.mxu0 %v1406
    %1839 = vmatprep.subr.mxu0 0.0
    %1840 = vmatpush1.msra.mxu0 0.0
    %1841 = vmatprep.subr.mxu0 0.0
    %1842 = vmatpush1.msra.mxu0 0.0
    %1843 = vmatprep.subr.mxu0 0.0
    %1844 = vmatpush1.msra.mxu0 0.0
    %1845 = vmatprep.subr.mxu0 0.0
    %1846 = vmatpush1.msra.mxu0 0.0
    %1847 = vmatprep.subr.mxu0 0.0
    %1848 = vmatpush1.msra.mxu0 0.0
    %1849 = vmatprep.subr.mxu0 0.0
    %1850 = vmatpush1.msra.mxu0 0.0
    %1851 = vmatprep.subr.mxu0 0.0
    %1852 = vmatpush1.msra.mxu0 0.0
    %1853 = vmatprep.subr.mxu0 0.0
    %1854 = vmatpush1.msra.mxu0 0.0
    %1855 = vmatprep.subr.mxu0 0.0
    %1856 = vmatpush1.msra.mxu0 0.0
    %1857 = vmatprep.subr.mxu0 0.0
    %1858 = vmatpush1.msra.mxu0 0.0
    %1859 = vmatprep.subr.mxu0 0.0
    %1860 = vmatpush1.msra.mxu0 0.0
    %1861 = vmatprep.subr.mxu0 0.0
    %1862 = vmatpush1.msra.mxu0 0.0
    %1863 = vmatprep.subr.mxu0 0.0
    %1864 = vmatpush1.msra.mxu0 0.0
    %1865 = vmatprep.subr.mxu0 0.0
    %1866 = vmatpush1.msra.mxu0 0.0
    %1867 = vmatprep.subr.mxu0 0.0
    %1868 = vmatpush1.msra.mxu0 0.0
    %1869 = vmatprep.subr.mxu0 0.0
    %1870 = vmatpush1.msra.mxu0 0.0
    %1871 = vmatprep.subr.mxu0 0.0
    %1872 = vmatpush1.msra.mxu0 0.0
    %1873 = vmatprep.subr.mxu0 0.0
    %1874 = vmatpush1.msra.mxu0 0.0
    %1875 = vmatprep.subr.mxu0 0.0
    %1876 = vmatpush1.msra.mxu0 0.0
    %1877 = vmatprep.subr.mxu0 0.0
    %1878 = vmatpush1.msra.mxu0 0.0
    %1879 = vmatprep.subr.mxu0 0.0
    %1880 = vmatpush1.msra.mxu0 0.0
    %1881 = vmatprep.subr.mxu0 0.0
    %1882 = vmatpush1.msra.mxu0 0.0
    %1883 = vmatprep.subr.mxu0 0.0
    %1884 = vmatpush1.msra.mxu0 0.0
    %1885 = vmatprep.subr.mxu0 0.0
    %1886 = vmatpush1.msra.mxu0 0.0
    %1887 = vmatprep.subr.mxu0 0.0
    %1888 = vmatpush1.msra.mxu0 0.0
    %1889 = vmatprep.subr.mxu0 0.0
    %1890 = vmatpush1.msra.mxu0 0.0
    %1891 = vmatprep.subr.mxu0 0.0
    %1892 = vmatpush1.msra.mxu0 0.0
    %1893 = vmatprep.subr.mxu0 0.0
    %1894 = vmatpush1.msra.mxu0 0.0
    %1895 = vmatprep.mubr.f32.mxu0 0.0
    %1896 = vmatmul.mubr.f32.gmra.mrb[0].mxu0 %v1829
    %v1897 = vpop.f32.mrb[0].mxu0
    %v1898 = vadd.f32 0.0, %v1897
    %v1899 = vpop.f32.mrb[0].mxu0
    %1900 = vdwg.mxu0
    %v1902 = vrot.slane %v1898, 5
    %v1903 = vrot.slane %v1898, 6
    %v1906 = vadd.f32 %v1394, %v1902
    %v1907 = vadd.f32 %v1399, %v1903
    %v1908 = vadd.f32 %v1906, %v1490
    %v1909 = vadd.f32 %v1907, %v1490
    %v1910 = vxor.u32 %v1908, 2147483648
    %v1911 = vxor.u32 %v1909, 2147483648
    %v1912 = vmul.f32 %v1910, 1.442695
    %v1913 = vpow.pop %v1912
    %v1914 = vmul.f32 %v1911, 1.442695
    %v1915 = vpow.pop %v1914
    %v1916 = vadd.f32 %v1913, 1.0
    %v1917 = vadd.f32 %v1915, 1.0
    %v1918 = vrcp.pop %v1916
    %v1919 = vmul.f32 1.0, %v1918
    %v1920 = vrcp.pop %v1917
    %v1921 = vmul.f32 1.0, %v1920
    %v1922 = vadd.f32 %v1898, %v1490
    %v1924 = vrot.slane %v1922, 5
    %v1925 = vrot.slane %v1922, 6
    %1926 = vrot.lane.b32.xlu0 %v1924, 96
    %v1927 = vpop.permute.xlu0 %1926
    %1928 = vrot.lane.b32.xlu0 %v1925, 96
    %v1929 = vpop.permute.xlu0 %1928
    %v1932 = vmul.f32 %v1919, %v1927
    %v1933 = vmul.f32 %v1921, %v1929
    %1936 = vrot.lane.b32.xlu0 %v1932, 32
    %v1937 = vpop.permute.xlu0 %1936
    %1938 = vrot.lane.b32.xlu0 %v1933, 32
    %v1939 = vpop.permute.xlu0 %1938
    %v1942 = vadd.f32 %v1394, %v1937
    %v1943 = vadd.f32 %v1399, %v1939
    %v1944 = vtanh.pop %v1942
    %v1945 = vtanh.pop %v1943
    %v1946 = vsub.f32 1.0, %v1919
    %v1947 = vsub.f32 1.0, %v1921
    %1950 = vrot.lane.b32.xlu0 %v1944, 64
    %v1951 = vpop.permute.xlu0 %1950
    %1952 = vrot.lane.b32.xlu0 %v1945, 64
    %v1953 = vpop.permute.xlu0 %1952
    %v1956 = vmul.f32 %v1946, %v1951
    %v1957 = vmul.f32 %v1947, %v1953
    %v1958 = vrot.slane %v1822, 7
    %v1959 = vrot.slane %v1823, 7
    %v1962 = vmul.f32 %v1919, %v1958
    %v1963 = vmul.f32 %v1921, %v1959
    %v1964 = vadd.f32 %v1956, %v1962
    %v1965 = vadd.f32 %v1957, %v1963
    %v1968 = vrot.slane %v1964, 3
    %v1969 = vrot.slane %v1965, 2
    %v1970 = vsel %vm619, %v1969, %v1968
    %v1971 = vsel %vm93, %v1970, 0
    %1973 = vmatprep.subr.mxu0 0.0
    %1974 = vmatpush1.msra.mxu0 %v1403
    %1975 = vmatprep.subr.mxu0 0.0
    %1976 = vmatpush1.msra.mxu0 %v1404
    %1977 = vmatprep.subr.mxu0 0.0
    %1978 = vmatpush1.msra.mxu0 %v1405
    %1979 = vmatprep.subr.mxu0 0.0
    %1980 = vmatpush1.msra.mxu0 %v1406
    %1981 = vmatprep.subr.mxu0 0.0
    %1982 = vmatpush1.msra.mxu0 0.0
    %1983 = vmatprep.subr.mxu0 0.0
    %1984 = vmatpush1.msra.mxu0 0.0
    %1985 = vmatprep.subr.mxu0 0.0
    %1986 = vmatpush1.msra.mxu0 0.0
    %1987 = vmatprep.subr.mxu0 0.0
    %1988 = vmatpush1.msra.mxu0 0.0
    %1989 = vmatprep.subr.mxu0 0.0
    %1990 = vmatpush1.msra.mxu0 0.0
    %1991 = vmatprep.subr.mxu0 0.0
    %1992 = vmatpush1.msra.mxu0 0.0
    %1993 = vmatprep.subr.mxu0 0.0
    %1994 = vmatpush1.msra.mxu0 0.0
    %1995 = vmatprep.subr.mxu0 0.0
    %1996 = vmatpush1.msra.mxu0 0.0
    %1997 = vmatprep.subr.mxu0 0.0
    %1998 = vmatpush1.msra.mxu0 0.0
    %1999 = vmatprep.subr.mxu0 0.0
    %2000 = vmatpush1.msra.mxu0 0.0
    %2001 = vmatprep.subr.mxu0 0.0
    %2002 = vmatpush1.msra.mxu0 0.0
    %2003 = vmatprep.subr.mxu0 0.0
    %2004 = vmatpush1.msra.mxu0 0.0
    %2005 = vmatprep.subr.mxu0 0.0
    %2006 = vmatpush1.msra.mxu0 0.0
    %2007 = vmatprep.subr.mxu0 0.0
    %2008 = vmatpush1.msra.mxu0 0.0
    %2009 = vmatprep.subr.mxu0 0.0
    %2010 = vmatpush1.msra.mxu0 0.0
    %2011 = vmatprep.subr.mxu0 0.0
    %2012 = vmatpush1.msra.mxu0 0.0
    %2013 = vmatprep.subr.mxu0 0.0
    %2014 = vmatpush1.msra.mxu0 0.0
    %2015 = vmatprep.subr.mxu0 0.0
    %2016 = vmatpush1.msra.mxu0 0.0
    %2017 = vmatprep.subr.mxu0 0.0
    %2018 = vmatpush1.msra.mxu0 0.0
    %2019 = vmatprep.subr.mxu0 0.0
    %2020 = vmatpush1.msra.mxu0 0.0
    %2021 = vmatprep.subr.mxu0 0.0
    %2022 = vmatpush1.msra.mxu0 0.0
    %2023 = vmatprep.subr.mxu0 0.0
    %2024 = vmatpush1.msra.mxu0 0.0
    %2025 = vmatprep.subr.mxu0 0.0
    %2026 = vmatpush1.msra.mxu0 0.0
    %2027 = vmatprep.subr.mxu0 0.0
    %2028 = vmatpush1.msra.mxu0 0.0
    %2029 = vmatprep.subr.mxu0 0.0
    %2030 = vmatpush1.msra.mxu0 0.0
    %2031 = vmatprep.subr.mxu0 0.0
    %2032 = vmatpush1.msra.mxu0 0.0
    %2033 = vmatprep.subr.mxu0 0.0
    %2034 = vmatpush1.msra.mxu0 0.0
    %2035 = vmatprep.subr.mxu0 0.0
    %2036 = vmatpush1.msra.mxu0 0.0
    %2037 = vmatprep.mubr.f32.mxu0 0.0
    %2038 = vmatmul.mubr.f32.gmra.mrb[0].mxu0 %v1971
    %v2039 = vpop.f32.mrb[0].mxu0
    %v2040 = vadd.f32 0.0, %v2039
    %v2041 = vpop.f32.mrb[0].mxu0
    %2042 = vdwg.mxu0
    %v2044 = vrot.slane %v2040, 4
    %v2045 = vrot.slane %v2040, 5
    %v2048 = vadd.f32 %v1394, %v2044
    %v2049 = vadd.f32 %v1399, %v2045
    %v2050 = vadd.f32 %v2048, %v1490
    %v2051 = vadd.f32 %v2049, %v1490
    %v2052 = vxor.u32 %v2050, 2147483648
    %v2053 = vxor.u32 %v2051, 2147483648
    %v2054 = vmul.f32 %v2052, 1.442695
    %v2055 = vpow.pop %v2054
    %v2056 = vmul.f32 %v2053, 1.442695
    %v2057 = vpow.pop %v2056
    %v2058 = vadd.f32 %v2055, 1.0
    %v2059 = vadd.f32 %v2057, 1.0
    %v2060 = vrcp.pop %v2058
    %v2061 = vmul.f32 1.0, %v2060
    %v2062 = vrcp.pop %v2059
    %v2063 = vmul.f32 1.0, %v2062
    %v2064 = vadd.f32 %v2040, %v1490
    %v2066 = vrot.slane %v2064, 4
    %v2067 = vrot.slane %v2064, 5
    %2068 = vrot.lane.b32.xlu0 %v2066, 96
    %v2069 = vpop.permute.xlu0 %2068
    %2070 = vrot.lane.b32.xlu0 %v2067, 96
    %v2071 = vpop.permute.xlu0 %2070
    %v2074 = vmul.f32 %v2061, %v2069
    %v2075 = vmul.f32 %v2063, %v2071
    %2078 = vrot.lane.b32.xlu0 %v2074, 32
    %v2079 = vpop.permute.xlu0 %2078
    %2080 = vrot.lane.b32.xlu0 %v2075, 32
    %v2081 = vpop.permute.xlu0 %2080
    %v2084 = vadd.f32 %v1394, %v2079
    %v2085 = vadd.f32 %v1399, %v2081
    %v2086 = vtanh.pop %v2084
    %v2087 = vtanh.pop %v2085
    %v2088 = vsub.f32 1.0, %v2061
    %v2089 = vsub.f32 1.0, %v2063
    %2092 = vrot.lane.b32.xlu0 %v2086, 64
    %v2093 = vpop.permute.xlu0 %2092
    %2094 = vrot.lane.b32.xlu0 %v2087, 64
    %v2095 = vpop.permute.xlu0 %2094
    %v2098 = vmul.f32 %v2088, %v2093
    %v2099 = vmul.f32 %v2089, %v2095
    %v2100 = vrot.slane %v1964, 7
    %v2101 = vrot.slane %v1965, 7
    %v2104 = vmul.f32 %v2061, %v2100
    %v2105 = vmul.f32 %v2063, %v2101
    %v2106 = vadd.f32 %v2098, %v2104
    %v2107 = vadd.f32 %v2099, %v2105
    %v2110 = vrot.slane %v2106, 4
    %v2111 = vrot.slane %v2107, 3
    %v2112 = vsel %vm619, %v2111, %v2110
    %v2113 = vsel %vm93, %v2112, 0
    %2115 = vmatprep.subr.mxu0 0.0
    %2116 = vmatpush1.msra.mxu0 %v1403
    %2117 = vmatprep.subr.mxu0 0.0
    %2118 = vmatpush1.msra.mxu0 %v1404
    %2119 = vmatprep.subr.mxu0 0.0
    %2120 = vmatpush1.msra.mxu0 %v1405
    %2121 = vmatprep.subr.mxu0 0.0
    %2122 = vmatpush1.msra.mxu0 %v1406
    %2123 = vmatprep.subr.mxu0 0.0
    %2124 = vmatpush1.msra.mxu0 0.0
    %2125 = vmatprep.subr.mxu0 0.0
    %2126 = vmatpush1.msra.mxu0 0.0
    %2127 = vmatprep.subr.mxu0 0.0
    %2128 = vmatpush1.msra.mxu0 0.0
    %2129 = vmatprep.subr.mxu0 0.0
    %2130 = vmatpush1.msra.mxu0 0.0
    %2131 = vmatprep.subr.mxu0 0.0
    %2132 = vmatpush1.msra.mxu0 0.0
    %2133 = vmatprep.subr.mxu0 0.0
    %2134 = vmatpush1.msra.mxu0 0.0
    %2135 = vmatprep.subr.mxu0 0.0
    %2136 = vmatpush1.msra.mxu0 0.0
    %2137 = vmatprep.subr.mxu0 0.0
    %2138 = vmatpush1.msra.mxu0 0.0
    %2139 = vmatprep.subr.mxu0 0.0
    %2140 = vmatpush1.msra.mxu0 0.0
    %2141 = vmatprep.subr.mxu0 0.0
    %2142 = vmatpush1.msra.mxu0 0.0
    %2143 = vmatprep.subr.mxu0 0.0
    %2144 = vmatpush1.msra.mxu0 0.0
    %2145 = vmatprep.subr.mxu0 0.0
    %2146 = vmatpush1.msra.mxu0 0.0
    %2147 = vmatprep.subr.mxu0 0.0
    %2148 = vmatpush1.msra.mxu0 0.0
    %2149 = vmatprep.subr.mxu0 0.0
    %2150 = vmatpush1.msra.mxu0 0.0
    %2151 = vmatprep.subr.mxu0 0.0
    %2152 = vmatpush1.msra.mxu0 0.0
    %2153 = vmatprep.subr.mxu0 0.0
    %2154 = vmatpush1.msra.mxu0 0.0
    %2155 = vmatprep.subr.mxu0 0.0
    %2156 = vmatpush1.msra.mxu0 0.0
    %2157 = vmatprep.subr.mxu0 0.0
    %2158 = vmatpush1.msra.mxu0 0.0
    %2159 = vmatprep.subr.mxu0 0.0
    %2160 = vmatpush1.msra.mxu0 0.0
    %2161 = vmatprep.subr.mxu0 0.0
    %2162 = vmatpush1.msra.mxu0 0.0
    %2163 = vmatprep.subr.mxu0 0.0
    %2164 = vmatpush1.msra.mxu0 0.0
    %2165 = vmatprep.subr.mxu0 0.0
    %2166 = vmatpush1.msra.mxu0 0.0
    %2167 = vmatprep.subr.mxu0 0.0
    %2168 = vmatpush1.msra.mxu0 0.0
    %2169 = vmatprep.subr.mxu0 0.0
    %2170 = vmatpush1.msra.mxu0 0.0
    %2171 = vmatprep.subr.mxu0 0.0
    %2172 = vmatpush1.msra.mxu0 0.0
    %2173 = vmatprep.subr.mxu0 0.0
    %2174 = vmatpush1.msra.mxu0 0.0
    %2175 = vmatprep.subr.mxu0 0.0
    %2176 = vmatpush1.msra.mxu0 0.0
    %2177 = vmatprep.subr.mxu0 0.0
    %2178 = vmatpush1.msra.mxu0 0.0
    %2179 = vmatprep.mubr.f32.mxu0 0.0
    %2180 = vmatmul.mubr.f32.gmra.mrb[0].mxu0 %v2113
    %v2181 = vpop.f32.mrb[0].mxu0
    %v2182 = vadd.f32 0.0, %v2181
    %v2183 = vpop.f32.mrb[0].mxu0
    %2184 = vdwg.mxu0
    %v2186 = vrot.slane %v2182, 3
    %v2187 = vrot.slane %v2182, 4
    %v2190 = vadd.f32 %v1394, %v2186
    %v2191 = vadd.f32 %v1399, %v2187
    %v2192 = vadd.f32 %v2190, %v1490
    %v2193 = vadd.f32 %v2191, %v1490
    %v2194 = vxor.u32 %v2192, 2147483648
    %v2195 = vxor.u32 %v2193, 2147483648
    %v2196 = vmul.f32 %v2194, 1.442695
    %v2197 = vpow.pop %v2196
    %v2198 = vmul.f32 %v2195, 1.442695
    %v2199 = vpow.pop %v2198
    %v2200 = vadd.f32 %v2197, 1.0
    %v2201 = vadd.f32 %v2199, 1.0
    %v2202 = vrcp.pop %v2200
    %v2203 = vmul.f32 1.0, %v2202
    %v2204 = vrcp.pop %v2201
    %v2205 = vmul.f32 1.0, %v2204
    %v2206 = vadd.f32 %v2182, %v1490
    %v2208 = vrot.slane %v2206, 3
    %v2209 = vrot.slane %v2206, 4
    %2210 = vrot.lane.b32.xlu0 %v2208, 96
    %v2211 = vpop.permute.xlu0 %2210
    %2212 = vrot.lane.b32.xlu0 %v2209, 96
    %v2213 = vpop.permute.xlu0 %2212
    %v2216 = vmul.f32 %v2203, %v2211
    %v2217 = vmul.f32 %v2205, %v2213
    %2220 = vrot.lane.b32.xlu0 %v2216, 32
    %v2221 = vpop.permute.xlu0 %2220
    %2222 = vrot.lane.b32.xlu0 %v2217, 32
    %v2223 = vpop.permute.xlu0 %2222
    %v2226 = vadd.f32 %v1394, %v2221
    %v2227 = vadd.f32 %v1399, %v2223
    %v2228 = vtanh.pop %v2226
    %v2229 = vtanh.pop %v2227
    %v2230 = vsub.f32 1.0, %v2203
    %v2231 = vsub.f32 1.0, %v2205
    %2234 = vrot.lane.b32.xlu0 %v2228, 64
    %v2235 = vpop.permute.xlu0 %2234
    %2236 = vrot.lane.b32.xlu0 %v2229, 64
    %v2237 = vpop.permute.xlu0 %2236
    %v2240 = vmul.f32 %v2230, %v2235
    %v2241 = vmul.f32 %v2231, %v2237
    %v2242 = vrot.slane %v2106, 7
    %v2243 = vrot.slane %v2107, 7
    %v2246 = vmul.f32 %v2203, %v2242
    %v2247 = vmul.f32 %v2205, %v2243
    %v2248 = vadd.f32 %v2240, %v2246
    %v2249 = vadd.f32 %v2241, %v2247
    %v2252 = vrot.slane %v2248, 5
    %v2253 = vrot.slane %v2249, 4
    %v2254 = vsel %vm619, %v2253, %v2252
    %v2255 = vsel %vm93, %v2254, 0
    %2257 = vmatprep.subr.mxu0 0.0
    %2258 = vmatpush1.msra.mxu0 %v1403
    %2259 = vmatprep.subr.mxu0 0.0
    %2260 = vmatpush1.msra.mxu0 %v1404
    %2261 = vmatprep.subr.mxu0 0.0
    %2262 = vmatpush1.msra.mxu0 %v1405
    %2263 = vmatprep.subr.mxu0 0.0
    %2264 = vmatpush1.msra.mxu0 %v1406
    %2265 = vmatprep.subr.mxu0 0.0
    %2266 = vmatpush1.msra.mxu0 0.0
    %2267 = vmatprep.subr.mxu0 0.0
    %2268 = vmatpush1.msra.mxu0 0.0
    %2269 = vmatprep.subr.mxu0 0.0
    %2270 = vmatpush1.msra.mxu0 0.0
    %2271 = vmatprep.subr.mxu0 0.0
    %2272 = vmatpush1.msra.mxu0 0.0
    %2273 = vmatprep.subr.mxu0 0.0
    %2274 = vmatpush1.msra.mxu0 0.0
    %2275 = vmatprep.subr.mxu0 0.0
    %2276 = vmatpush1.msra.mxu0 0.0
    %2277 = vmatprep.subr.mxu0 0.0
    %2278 = vmatpush1.msra.mxu0 0.0
    %2279 = vmatprep.subr.mxu0 0.0
    %2280 = vmatpush1.msra.mxu0 0.0
    %2281 = vmatprep.subr.mxu0 0.0
    %2282 = vmatpush1.msra.mxu0 0.0
    %2283 = vmatprep.subr.mxu0 0.0
    %2284 = vmatpush1.msra.mxu0 0.0
    %2285 = vmatprep.subr.mxu0 0.0
    %2286 = vmatpush1.msra.mxu0 0.0
    %2287 = vmatprep.subr.mxu0 0.0
    %2288 = vmatpush1.msra.mxu0 0.0
    %2289 = vmatprep.subr.mxu0 0.0
    %2290 = vmatpush1.msra.mxu0 0.0
    %2291 = vmatprep.subr.mxu0 0.0
    %2292 = vmatpush1.msra.mxu0 0.0
    %2293 = vmatprep.subr.mxu0 0.0
    %2294 = vmatpush1.msra.mxu0 0.0
    %2295 = vmatprep.subr.mxu0 0.0
    %2296 = vmatpush1.msra.mxu0 0.0
    %2297 = vmatprep.subr.mxu0 0.0
    %2298 = vmatpush1.msra.mxu0 0.0
    %2299 = vmatprep.subr.mxu0 0.0
    %2300 = vmatpush1.msra.mxu0 0.0
    %2301 = vmatprep.subr.mxu0 0.0
    %2302 = vmatpush1.msra.mxu0 0.0
    %2303 = vmatprep.subr.mxu0 0.0
    %2304 = vmatpush1.msra.mxu0 0.0
    %2305 = vmatprep.subr.mxu0 0.0
    %2306 = vmatpush1.msra.mxu0 0.0
    %2307 = vmatprep.subr.mxu0 0.0
    %2308 = vmatpush1.msra.mxu0 0.0
    %2309 = vmatprep.subr.mxu0 0.0
    %2310 = vmatpush1.msra.mxu0 0.0
    %2311 = vmatprep.subr.mxu0 0.0
    %2312 = vmatpush1.msra.mxu0 0.0
    %2313 = vmatprep.subr.mxu0 0.0
    %2314 = vmatpush1.msra.mxu0 0.0
    %2315 = vmatprep.subr.mxu0 0.0
    %2316 = vmatpush1.msra.mxu0 0.0
    %2317 = vmatprep.subr.mxu0 0.0
    %2318 = vmatpush1.msra.mxu0 0.0
    %2319 = vmatprep.subr.mxu0 0.0
    %2320 = vmatpush1.msra.mxu0 0.0
    %2321 = vmatprep.mubr.f32.mxu0 0.0
    %2322 = vmatmul.mubr.f32.gmra.mrb[0].mxu0 %v2255
    %v2323 = vpop.f32.mrb[0].mxu0
    %v2324 = vadd.f32 0.0, %v2323
    %v2325 = vpop.f32.mrb[0].mxu0
    %2326 = vdwg.mxu0
    %v2328 = vrot.slane %v2324, 2
    %v2329 = vrot.slane %v2324, 3
    %v2332 = vadd.f32 %v1394, %v2328
    %v2333 = vadd.f32 %v1399, %v2329
    %v2334 = vadd.f32 %v2332, %v1490
    %v2335 = vadd.f32 %v2333, %v1490
    %v2336 = vxor.u32 %v2334, 2147483648
    %v2337 = vxor.u32 %v2335, 2147483648
    %v2338 = vmul.f32 %v2336, 1.442695
    %v2339 = vpow.pop %v2338
    %v2340 = vmul.f32 %v2337, 1.442695
    %v2341 = vpow.pop %v2340
    %v2342 = vadd.f32 %v2339, 1.0
    %v2343 = vadd.f32 %v2341, 1.0
    %v2344 = vrcp.pop %v2342
    %v2345 = vmul.f32 1.0, %v2344
    %v2346 = vrcp.pop %v2343
    %v2347 = vmul.f32 1.0, %v2346
    %v2348 = vadd.f32 %v2324, %v1490
    %v2350 = vrot.slane %v2348, 2
    %v2351 = vrot.slane %v2348, 3
    %2352 = vrot.lane.b32.xlu0 %v2350, 96
    %v2353 = vpop.permute.xlu0 %2352
    %2354 = vrot.lane.b32.xlu0 %v2351, 96
    %v2355 = vpop.permute.xlu0 %2354
    %v2358 = vmul.f32 %v2345, %v2353
    %v2359 = vmul.f32 %v2347, %v2355
    %2362 = vrot.lane.b32.xlu0 %v2358, 32
    %v2363 = vpop.permute.xlu0 %2362
    %2364 = vrot.lane.b32.xlu0 %v2359, 32
    %v2365 = vpop.permute.xlu0 %2364
    %v2368 = vadd.f32 %v1394, %v2363
    %v2369 = vadd.f32 %v1399, %v2365
    %v2370 = vtanh.pop %v2368
    %v2371 = vtanh.pop %v2369
    %v2372 = vsub.f32 1.0, %v2345
    %v2373 = vsub.f32 1.0, %v2347
    %2376 = vrot.lane.b32.xlu0 %v2370, 64
    %v2377 = vpop.permute.xlu0 %2376
    %2378 = vrot.lane.b32.xlu0 %v2371, 64
    %v2379 = vpop.permute.xlu0 %2378
    %v2382 = vmul.f32 %v2372, %v2377
    %v2383 = vmul.f32 %v2373, %v2379
    %v2384 = vrot.slane %v2248, 7
    %v2385 = vrot.slane %v2249, 7
    %v2388 = vmul.f32 %v2345, %v2384
    %v2389 = vmul.f32 %v2347, %v2385
    %v2390 = vadd.f32 %v2382, %v2388
    %v2391 = vadd.f32 %v2383, %v2389
    %v2394 = vrot.slane %v2390, 6
    %v2395 = vrot.slane %v2391, 5
    %v2396 = vsel %vm619, %v2395, %v2394
    %v2397 = vsel %vm93, %v2396, 0
    %2399 = vmatprep.subr.mxu0 0.0
    %2400 = vmatpush1.msra.mxu0 %v1403
    %2401 = vmatprep.subr.mxu0 0.0
    %2402 = vmatpush1.msra.mxu0 %v1404
    %2403 = vmatprep.subr.mxu0 0.0
    %2404 = vmatpush1.msra.mxu0 %v1405
    %2405 = vmatprep.subr.mxu0 0.0
    %2406 = vmatpush1.msra.mxu0 %v1406
    %2407 = vmatprep.subr.mxu0 0.0
    %2408 = vmatpush1.msra.mxu0 0.0
    %2409 = vmatprep.subr.mxu0 0.0
    %2410 = vmatpush1.msra.mxu0 0.0
    %2411 = vmatprep.subr.mxu0 0.0
    %2412 = vmatpush1.msra.mxu0 0.0
    %2413 = vmatprep.subr.mxu0 0.0
    %2414 = vmatpush1.msra.mxu0 0.0
    %2415 = vmatprep.subr.mxu0 0.0
    %2416 = vmatpush1.msra.mxu0 0.0
    %2417 = vmatprep.subr.mxu0 0.0
    %2418 = vmatpush1.msra.mxu0 0.0
    %2419 = vmatprep.subr.mxu0 0.0
    %2420 = vmatpush1.msra.mxu0 0.0
    %2421 = vmatprep.subr.mxu0 0.0
    %2422 = vmatpush1.msra.mxu0 0.0
    %2423 = vmatprep.subr.mxu0 0.0
    %2424 = vmatpush1.msra.mxu0 0.0
    %2425 = vmatprep.subr.mxu0 0.0
    %2426 = vmatpush1.msra.mxu0 0.0
    %2427 = vmatprep.subr.mxu0 0.0
    %2428 = vmatpush1.msra.mxu0 0.0
    %2429 = vmatprep.subr.mxu0 0.0
    %2430 = vmatpush1.msra.mxu0 0.0
    %2431 = vmatprep.subr.mxu0 0.0
    %2432 = vmatpush1.msra.mxu0 0.0
    %2433 = vmatprep.subr.mxu0 0.0
    %2434 = vmatpush1.msra.mxu0 0.0
    %2435 = vmatprep.subr.mxu0 0.0
    %2436 = vmatpush1.msra.mxu0 0.0
    %2437 = vmatprep.subr.mxu0 0.0
    %2438 = vmatpush1.msra.mxu0 0.0
    %2439 = vmatprep.subr.mxu0 0.0
    %2440 = vmatpush1.msra.mxu0 0.0
    %2441 = vmatprep.subr.mxu0 0.0
    %2442 = vmatpush1.msra.mxu0 0.0
    %2443 = vmatprep.subr.mxu0 0.0
    %2444 = vmatpush1.msra.mxu0 0.0
    %2445 = vmatprep.subr.mxu0 0.0
    %2446 = vmatpush1.msra.mxu0 0.0
    %2447 = vmatprep.subr.mxu0 0.0
    %2448 = vmatpush1.msra.mxu0 0.0
    %2449 = vmatprep.subr.mxu0 0.0
    %2450 = vmatpush1.msra.mxu0 0.0
    %2451 = vmatprep.subr.mxu0 0.0
    %2452 = vmatpush1.msra.mxu0 0.0
    %2453 = vmatprep.subr.mxu0 0.0
    %2454 = vmatpush1.msra.mxu0 0.0
    %2455 = vmatprep.subr.mxu0 0.0
    %2456 = vmatpush1.msra.mxu0 0.0
    %2457 = vmatprep.subr.mxu0 0.0
    %2458 = vmatpush1.msra.mxu0 0.0
    %2459 = vmatprep.subr.mxu0 0.0
    %2460 = vmatpush1.msra.mxu0 0.0
    %2461 = vmatprep.subr.mxu0 0.0
    %2462 = vmatpush1.msra.mxu0 0.0
    %2463 = vmatprep.mubr.f32.mxu0 0.0
    %2464 = vmatmul.mubr.f32.gmra.mrb[0].mxu0 %v2397
    %v2465 = vpop.f32.mrb[0].mxu0
    %v2466 = vadd.f32 0.0, %v2465
    %v2467 = vpop.f32.mrb[0].mxu0
    %2468 = vdwg.mxu0
    %v2470 = vrot.slane %v2466, 1
    %v2471 = vrot.slane %v2466, 2
    %v2474 = vadd.f32 %v1394, %v2470
    %v2475 = vadd.f32 %v1399, %v2471
    %v2476 = vadd.f32 %v2474, %v1490
    %v2477 = vadd.f32 %v2475, %v1490
    %v2478 = vxor.u32 %v2476, 2147483648
    %v2479 = vxor.u32 %v2477, 2147483648
    %v2480 = vmul.f32 %v2478, 1.442695
    %v2481 = vpow.pop %v2480
    %v2482 = vmul.f32 %v2479, 1.442695
    %v2483 = vpow.pop %v2482
    %v2484 = vadd.f32 %v2481, 1.0
    %v2485 = vadd.f32 %v2483, 1.0
    %v2486 = vrcp.pop %v2484
    %v2487 = vmul.f32 1.0, %v2486
    %v2488 = vrcp.pop %v2485
    %v2489 = vmul.f32 1.0, %v2488
    %v2490 = vadd.f32 %v2466, %v1490
    %v2492 = vrot.slane %v2490, 1
    %v2493 = vrot.slane %v2490, 2
    %2494 = vrot.lane.b32.xlu0 %v2492, 96
    %v2495 = vpop.permute.xlu0 %2494
    %2496 = vrot.lane.b32.xlu0 %v2493, 96
    %v2497 = vpop.permute.xlu0 %2496
    %v2500 = vmul.f32 %v2487, %v2495
    %v2501 = vmul.f32 %v2489, %v2497
    %2504 = vrot.lane.b32.xlu0 %v2500, 32
    %v2505 = vpop.permute.xlu0 %2504
    %2506 = vrot.lane.b32.xlu0 %v2501, 32
    %v2507 = vpop.permute.xlu0 %2506
    %v2510 = vadd.f32 %v1394, %v2505
    %v2511 = vadd.f32 %v1399, %v2507
    %v2512 = vtanh.pop %v2510
    %v2513 = vtanh.pop %v2511
    %v2514 = vsub.f32 1.0, %v2487
    %v2515 = vsub.f32 1.0, %v2489
    %2518 = vrot.lane.b32.xlu0 %v2512, 64
    %v2519 = vpop.permute.xlu0 %2518
    %2520 = vrot.lane.b32.xlu0 %v2513, 64
    %v2521 = vpop.permute.xlu0 %2520
    %v2524 = vmul.f32 %v2514, %v2519
    %v2525 = vmul.f32 %v2515, %v2521
    %v2526 = vrot.slane %v2390, 7
    %v2527 = vrot.slane %v2391, 7
    %v2530 = vmul.f32 %v2487, %v2526
    %v2531 = vmul.f32 %v2489, %v2527
    %v2532 = vadd.f32 %v2524, %v2530
    %v2533 = vadd.f32 %v2525, %v2531
    %v2534 = vld [vmem:[%s8] sm:$0xff]
    %v2535 = vld [vmem:[%s8 + $0x8] sm:$0xff]
    %v2536 = vld [vmem:[%s8 + $0x10] sm:$0xff]
    %v2537 = vld [vmem:[%s8 + $0x18] sm:$0xff]
    %v2538 = vld [vmem:[%s9] sm:$0x1]
    %v2540 = vlaneseq
    %v2541 = vshrl.u32 %v2540, 7
    %v2542 = vsub.s32 0, %v2541
    %v2543 = vrot.slane %v2538, %v2542
    %v2547 = vrot.slane %v2532, 7
    %v2548 = vrot.slane %v2533, 6
    %v2549 = vsel %vm619, %v2548, %v2547
    %v2550 = vsel %vm93, %v2549, 0
    %2552 = vmatprep.subr.mxu0 0.0
    %2553 = vmatpush1.msra.mxu0 %v2534
    %2554 = vmatprep.subr.mxu0 0.0
    %2555 = vmatpush1.msra.mxu0 %v2535
    %2556 = vmatprep.subr.mxu0 0.0
    %2557 = vmatpush1.msra.mxu0 %v2536
    %2558 = vmatprep.subr.mxu0 0.0
    %2559 = vmatpush1.msra.mxu0 %v2537
    %2560 = vmatprep.subr.mxu0 0.0
    %2561 = vmatpush1.msra.mxu0 0.0
    %2562 = vmatprep.subr.mxu0 0.0
    %2563 = vmatpush1.msra.mxu0 0.0
    %2564 = vmatprep.subr.mxu0 0.0
    %2565 = vmatpush1.msra.mxu0 0.0
    %2566 = vmatprep.subr.mxu0 0.0
    %2567 = vmatpush1.msra.mxu0 0.0
    %2568 = vmatprep.subr.mxu0 0.0
    %2569 = vmatpush1.msra.mxu0 0.0
    %2570 = vmatprep.subr.mxu0 0.0
    %2571 = vmatpush1.msra.mxu0 0.0
    %2572 = vmatprep.subr.mxu0 0.0
    %2573 = vmatpush1.msra.mxu0 0.0
    %2574 = vmatprep.subr.mxu0 0.0
    %2575 = vmatpush1.msra.mxu0 0.0
    %2576 = vmatprep.subr.mxu0 0.0
    %2577 = vmatpush1.msra.mxu0 0.0
    %2578 = vmatprep.subr.mxu0 0.0
    %2579 = vmatpush1.msra.mxu0 0.0
    %2580 = vmatprep.subr.mxu0 0.0
    %2581 = vmatpush1.msra.mxu0 0.0
    %2582 = vmatprep.subr.mxu0 0.0
    %2583 = vmatpush1.msra.mxu0 0.0
    %2584 = vmatprep.subr.mxu0 0.0
    %2585 = vmatpush1.msra.mxu0 0.0
    %2586 = vmatprep.subr.mxu0 0.0
    %2587 = vmatpush1.msra.mxu0 0.0
    %2588 = vmatprep.subr.mxu0 0.0
    %2589 = vmatpush1.msra.mxu0 0.0
    %2590 = vmatprep.subr.mxu0 0.0
    %2591 = vmatpush1.msra.mxu0 0.0
    %2592 = vmatprep.subr.mxu0 0.0
    %2593 = vmatpush1.msra.mxu0 0.0
    %2594 = vmatprep.subr.mxu0 0.0
    %2595 = vmatpush1.msra.mxu0 0.0
    %2596 = vmatprep.subr.mxu0 0.0
    %2597 = vmatpush1.msra.mxu0 0.0
    %2598 = vmatprep.subr.mxu0 0.0
    %2599 = vmatpush1.msra.mxu0 0.0
    %2600 = vmatprep.subr.mxu0 0.0
    %2601 = vmatpush1.msra.mxu0 0.0
    %2602 = vmatprep.subr.mxu0 0.0
    %2603 = vmatpush1.msra.mxu0 0.0
    %2604 = vmatprep.subr.mxu0 0.0
    %2605 = vmatpush1.msra.mxu0 0.0
    %2606 = vmatprep.subr.mxu0 0.0
    %2607 = vmatpush1.msra.mxu0 0.0
    %2608 = vmatprep.subr.mxu0 0.0
    %2609 = vmatpush1.msra.mxu0 0.0
    %2610 = vmatprep.subr.mxu0 0.0
    %2611 = vmatpush1.msra.mxu0 0.0
    %2612 = vmatprep.subr.mxu0 0.0
    %2613 = vmatpush1.msra.mxu0 0.0
    %2614 = vmatprep.subr.mxu0 0.0
    %2615 = vmatpush1.msra.mxu0 0.0
    %2616 = vmatprep.mubr.f32.mxu0 0.0
    %2617 = vmatmul.mubr.f32.gmra.mrb[0].mxu0 %v2550
    %v2618 = vpop.f32.mrb[0].mxu0
    %v2619 = vadd.f32 %v2543, %v2618
    %v2620 = vpop.f32.mrb[0].mxu0
    %2621 = vdwg.mxu0
    %v2622 = vxor.u32 %v2619, 2147483648
    %v2623 = vmul.f32 %v2622, 1.442695
    %v2624 = vpow.pop %v2623
    %v2625 = vadd.f32 %v2624, 1.0
    %v2626 = vrcp.pop %v2625
    %v2627 = vmul.f32 1.0, %v2626
    %vm2628 = vcmask 123904
    %2629 = vst.msk [vmem:[#allocation8] sm:$0x3] %vm2628, %v2627
    // Predicated region
    $region54: #{tpu_custom_call.1} parent=1 // pred_check
      _
    $region55: #{tpu_custom_call.1} parent=1 // pred_check_branch
      %2631 = sbr.rel (0) target = $region57
    $region56: #{tpu_custom_call.1} parent=1 // pred_region
      %s2633 = ssub.s32 32, 32
      %2634 = vsyncadd [#allocation4], %s2633
      %s2636 = sshll.u32 [#allocation8], 4
      %s2637 = int_to_ptr.vmem [resolvable:$true] %s2636
      %2639 = dma.vmem_to_hbm [thread:$0]  %s2637, 32, %s10, [#allocation4]
    $region57: #{tpu_custom_call.1} parent=1 // pred_fallthru
      _
    // Predicated region
    $region58: #{tpu_custom_call.1} parent=1 // pred_check
      _
    $region59: #{tpu_custom_call.1} parent=1 // pred_check_branch
      %2641 = sbr.rel (0) target = $region61
    $region60: #{tpu_custom_call.1} parent=1 // pred_region
      %s2643 = ssub.s32 256, 256
      %2644 = vsyncadd [#allocation10], %s2643
      %s2645 = sshll.u32 [#allocation9], 4
      %s2646 = int_to_ptr.vmem [resolvable:$true] %s2645
      %2651 = dma.vmem_to_hbm [thread:$0]  %s2646, 256, %s11, [#allocation10], 128, 128, 8
    $region61: #{tpu_custom_call.1} parent=1 // pred_fallthru
      _
    // Predicated region
    $region62: #{tpu_custom_call.1} parent=1 // pred_check
      _
    $region63: #{tpu_custom_call.1} parent=1 // pred_check_branch
      %2653 = sbr.rel (0) target = $region65
    $region64: #{tpu_custom_call.1} parent=1 // pred_region
      %2654 = dma.done [#allocation4], 32
    $region65: #{tpu_custom_call.1} parent=1 // pred_fallthru
      _
    // Predicated region
    $region66: #{tpu_custom_call.1} parent=1 // pred_check
      _
    $region67: #{tpu_custom_call.1} parent=1 // pred_check_branch
      %2656 = sbr.rel (0) target = $region69
    $region68: #{tpu_custom_call.1} parent=1 // pred_region
      %2657 = dma.done [#allocation10], 256
    $region69: #{tpu_custom_call.1} parent=1 // pred_fallthru
      _
    %2658 = vsyncpa [#allocation3], 1
    %2659 = vsyncpa [#allocation6], 1
    %2660 = vsyncpa [#allocation4], 1
    %2661 = vsyncpa [#allocation10], 1

</llo_original>
